<compile_context>
chip_gen: v7x
topology: tpu7x:2x2x1
jax: 0.10.0
libtpu: 0.0.40
codegen_flags: <defaults>
</compile_context>

<pallas_src>
import functools

import numpy as np
import jax
import jax.numpy as jnp
from jax.experimental import pallas as pl
from jax.experimental.pallas import tpu as pltpu

K_SA, PAD_SA = 3, 1   # conv_sa: Conv1d(c_out, 1, 3, padding=1) over H
K_TA, PAD_TA = 9, 4   # conv_ta: Conv1d(c_out, 1, 9, padding=4) over W


def _attentive_kernel(y_ref, wup_ref, bup_ref, wsaT_ref, wtaT_ref,
                      wfc1_ref, bfc1_ref, wfc2_ref, bfc2_ref,
                      bsa_ref, bta_ref, o_ref, *, H, W):
    f32 = jnp.float32
    HW = H * W
    L = y_ref.shape[-1]                  # = B * HW lanes in this block
    log2w = W.bit_length() - 1

    def rot(x, shift):
        """Circular roll along lanes: result[..., s] = x[..., (s - shift) % L]."""
        lx = x.shape[-1]
        s = shift % lx
        if s == 0:
            return x
        return pltpu.roll(x, s, x.ndim - 1)

    def from_right(x, d):                # result[s] = x[(s + d) % L]
        return rot(x, -d)

    def from_left(x, d):                 # result[s] = x[(s - d) % L]
        return rot(x, d)

    # Weights / biases: loaded once per grid step, shared by all B samples.
    wup = wup_ref[...].astype(f32)       # (c_out, c_in)
    bup = bup_ref[...].astype(f32)       # (c_out, 1)
    wsaT = wsaT_ref[...].astype(f32)     # (K_SA, c_out)
    wtaT = wtaT_ref[...].astype(f32)     # (K_TA, c_out)
    wfc1 = wfc1_ref[...].astype(f32)     # (c_half, c_out)
    bfc1 = bfc1_ref[...].astype(f32)     # (c_half, 1)
    wfc2 = wfc2_ref[...].astype(f32)     # (c_out, c_half)
    bfc2 = bfc2_ref[...].astype(f32)     # (c_out, 1)
    bsa = bsa_ref[0]                     # SMEM scalar
    bta = bta_ref[0]                     # SMEM scalar

    # Lane-index helpers (hoisted; sample-local indices need HW, W pow-of-two).
    lane = jax.lax.broadcasted_iota(jnp.int32, (1, L), 1)
    spos = lane & (HW - 1)               # sample-local spatial index
    hpos = spos >> log2w                 # h = spos // W
    wpos = spos & (W - 1)                # w = spos %  W

    w_dists = [1 << t for t in range(log2w)]                    # 1..W/2
    h_dists = [W << t for t in range(H.bit_length() - 1)]       # W..W*H/2
    hw_dists = [1 << t for t in range(HW.bit_length() - 1)]     # 1..HW/2
    bit_set = {d: (lane & d) != 0 for d in hw_dists}

    # Tap-shift validity masks for the two 1-D convolutions (sample-local,
    # so cross-sample / wrap-around tap reads are always masked off).
    valid_sa = [jnp.logical_and(hpos + (k - PAD_SA) >= 0, hpos + (k - PAD_SA) < H)
                for k in range(K_SA)]
    valid_ta = [jnp.logical_and(wpos + (k - PAD_TA) >= 0, wpos + (k - PAD_TA) < W)
                for k in range(K_TA)]

    def group_sum(v, dists):
        # After the stages, group-representative lanes hold the full group sum
        # (other lanes hold partial/cross-group sums that are never consumed).
        for d in dists:
            v = v + from_right(v, d)
        return v

    def expand(g, dists):
        # Broadcast representative-lane values over their group (small bit
        # first); every lane ends with the value of its group-base lane.
        for d in dists:
            g = jnp.where(bit_set[d], from_left(g, d), g)
        return g

    x = y_ref[...].astype(f32)                                            # (c_in, L)

    # conv_up: 1x1 conv == channel-mixing matmul (MXU, lane-dense N = B*HW).
    yu = jnp.dot(wup, x, preferred_element_type=f32) + bup                # (c_out, L)

    # ---- attention over H: mean over W, conv_sa (k=3, pad=1), sigmoid ----
    se = group_sum(yu, w_dists) * (1.0 / W)          # valid at w==0 lanes
    taps = jnp.dot(wsaT, se, preferred_element_type=f32)                  # (K_SA, L)
    acc = jnp.zeros((1, L), f32)
    for k in range(K_SA):
        acc = acc + jnp.where(valid_sa[k],
                              from_right(taps[k:k + 1, :], (k - PAD_SA) * W), 0.0)
    gate = expand(jax.nn.sigmoid(acc + bsa), w_dists)                     # (1, L)
    # y = y * se1.unsqueeze(-1) + y   (gate broadcast over C and W)
    yu = yu * (gate + 1.0)

    # ---- attention over W: mean over H, conv_ta (k=9, pad=4), sigmoid ----
    se = group_sum(yu, h_dists) * (1.0 / H)          # valid at h==0 lanes
    taps = jnp.dot(wtaT, se, preferred_element_type=f32)                  # (K_TA, L)
    acc = jnp.zeros((1, L), f32)
    for k in range(K_TA):
        acc = acc + jnp.where(valid_ta[k],
                              from_right(taps[k:k + 1, :], k - PAD_TA), 0.0)
    gate = expand(jax.nn.sigmoid(acc + bta), h_dists)                     # (1, L)
    # y = y * se1.unsqueeze(-2) + y   (gate broadcast over C and H)
    yu = yu * (gate + 1.0)

    # ---- channel (SE) attention: per-sample global mean, fc1+relu, fc2+sigmoid ----
    se = group_sum(yu, hw_dists) * (1.0 / HW)        # valid at sample-base lanes
    h1 = jnp.maximum(jnp.dot(wfc1, se, preferred_element_type=f32) + bfc1, 0.0)
    h1 = expand(h1, hw_dists)                        # broadcast on the smaller c_half slab
    s2 = jax.nn.sigmoid(jnp.dot(wfc2, h1, preferred_element_type=f32) + bfc2)
    o_ref[...] = (yu * (s2 + 1.0)).astype(o_ref.dtype)                    # lane-dense store


def attentive_block_pallas(y, params, *, target_block_bytes=2 << 20):
    N, c_in, H, W = y.shape
    c_out = params["wup"].shape[0]
    c_half = params["wfc1"].shape[0]
    HW = H * W
    assert (H & (H - 1)) == 0 and (W & (W - 1)) == 0, "H and W must be powers of two"
    assert HW % 128 == 0, "H*W must be a multiple of 128 (lane-dense blocks)"
    # TODO(synk): general H/W needs masked group reductions + lane-padded blocks.

    # Batch-block size: sized for MiB-scale DMA transfers, a divisor of N (no
    # jnp.pad copy), and >=2 grid steps when possible (v7x megacore sharding).
    per_sample = (c_in + c_out) * HW * 4
    if N <= 1:
        B = max(N, 1)
    else:
        cap = max(1, min(target_block_bytes // per_sample, N // 2))
        B = 1
        for b in range(int(cap), 0, -1):
            if N % b == 0:
                B = b
                break
    n_blocks = N // B
    L = B * HW

    # Channel-major, lane-stacked layout: (c_in, N*HW); sample n at lanes
    # [n*HW, (n+1)*HW), spatial index s = h*W + w.
    y_cm = jnp.transpose(y.astype(jnp.float32), (1, 0, 2, 3)).reshape(c_in, N * HW)

    args = (
        y_cm,                                              # (c_in, N*HW)
        params["wup"].astype(jnp.float32),                 # (c_out, c_in)
        params["bup"].reshape(c_out, 1).astype(jnp.float32),
        params["wsa"].T.astype(jnp.float32),               # (K_SA, c_out)
        params["wta"].T.astype(jnp.float32),               # (K_TA, c_out)
        params["wfc1"].astype(jnp.float32),                # (c_half, c_out)
        params["bfc1"].reshape(c_half, 1).astype(jnp.float32),
        params["wfc2"].astype(jnp.float32),                # (c_out, c_half)
        params["bfc2"].reshape(c_out, 1).astype(jnp.float32),
        params["bsa"].reshape(1).astype(jnp.float32),      # scalar -> SMEM
        params["bta"].reshape(1).astype(jnp.float32),      # scalar -> SMEM
    )

    def const_spec(a):
        nd = a.ndim
        return pl.BlockSpec(a.shape, lambda n, _nd=nd: (0,) * _nd)

    smem_spec = pl.BlockSpec(memory_space=pltpu.MemorySpace.SMEM)

    in_specs = [pl.BlockSpec((c_in, L), lambda n: (0, n))]
    in_specs += [const_spec(a) for a in args[1:9]]
    in_specs += [smem_spec, smem_spec]
    out_spec = pl.BlockSpec((c_out, L), lambda n: (0, n))

    # VMEM budget: double-buffered in/out blocks + headroom for the (c_out, L)
    # f32 intermediates; clamped to a range that is safe on v5e/v6e/v7x.
    io_bytes = (c_in + c_out) * L * 4
    vmem_limit = int(min(48 << 20, max(32 << 20, 2 * io_bytes + 16 * c_out * L * 4)))

    out = pl.pallas_call(
        functools.partial(_attentive_kernel, H=H, W=W),
        out_shape=jax.ShapeDtypeStruct((c_out, N * HW), jnp.float32),
        grid=(n_blocks,),
        in_specs=in_specs,
        out_specs=out_spec,
        compiler_params=pltpu.CompilerParams(
            dimension_semantics=("parallel",),      # independent batch blocks
            vmem_limit_bytes=vmem_limit),
    )(*args)
    return jnp.transpose(out.reshape(c_out, N, H, W), (1, 0, 2, 3))


def init_params(key, c_in, c_out):
    """Synthetic params matching AttentiveBlock shapes.  All tensors are made
    nonzero (the PyTorch init zeros conv_ta / fc2c) so every branch of the
    forward pass is actually exercised by the test."""
    c_half = c_out // 2
    ks = jax.random.split(key, 10)

    def rnd(k, shape, scale):
        return jax.random.normal(k, shape, jnp.float32) * scale

    return {
        "wup": rnd(ks[0], (c_out, c_in), 0.3),
        "bup": rnd(ks[1], (c_out,), 0.1),
        "wsa": rnd(ks[2], (c_out, K_SA), 0.3),
        "bsa": rnd(ks[3], (), 0.1),
        "wta": rnd(ks[4], (c_out, K_TA), 0.3),
        "bta": rnd(ks[5], (), 0.1),
        "wfc1": rnd(ks[6], (c_half, c_out), 0.4),
        "bfc1": rnd(ks[7], (c_half,), 0.1),
        "wfc2": rnd(ks[8], (c_out, c_half), 0.4),
        "bfc2": rnd(ks[9], (c_out,), 0.1),
    }


def attentive_block_ref(y, params):
    """Pure-JAX reference mirroring the PyTorch forward exactly."""
    P = jax.lax.Precision.HIGHEST
    N, c_in, H, W = y.shape
    yu = (jnp.einsum("oc,nchw->nohw", params["wup"], y, precision=P)
          + params["bup"][None, :, None, None])

    se = yu.mean(-1)                                               # (N, c_out, H)
    sep = jnp.pad(se, ((0, 0), (0, 0), (PAD_SA, PAD_SA)))
    conv = params["bsa"] + sum(
        jnp.einsum("c,nch->nh", params["wsa"][:, k], sep[:, :, k:k + H], precision=P)
        for k in range(K_SA))
    att = jax.nn.sigmoid(conv)                                     # (N, H)
    yu = yu * att[:, None, :, None] + yu

    se = yu.mean(-2)                                               # (N, c_out, W)
    sep = jnp.pad(se, ((0, 0), (0, 0), (PAD_TA, PAD_TA)))
    conv = params["bta"] + sum(
        jnp.einsum("c,ncw->nw", params["wta"][:, k], sep[:, :, k:k + W], precision=P)
        for k in range(K_TA))
    att = jax.nn.sigmoid(conv)                                     # (N, W)
    yu = yu * att[:, None, None, :] + yu

    se = yu.mean(-1).mean(-1)                                      # (N, c_out)
    h1 = jax.nn.relu(jnp.dot(se, params["wfc1"].T, precision=P) + params["bfc1"])
    s2 = jax.nn.sigmoid(jnp.dot(h1, params["wfc2"].T, precision=P) + params["bfc2"])
    yu = yu * s2[:, :, None, None] + yu
    return yu


if __name__ == "__main__":
    N, c_in, c_out, H, W = 2, 4, 8, 16, 16
    key = jax.random.PRNGKey(0)
    kx, kp = jax.random.split(key)
    y = jax.random.normal(kx, (N, c_in, H, W), jnp.float32)
    params = init_params(kp, c_in, c_out)

    out = jax.block_until_ready(attentive_block_pallas(y, params))
    ref = attentive_block_ref(y, params)

    assert out.shape == (N, c_out, H, W)
    np.testing.assert_allclose(np.asarray(out), np.asarray(ref), rtol=1e-4, atol=1e-4)
    print("KERNEL_OK")
</pallas_src>

<mosaic_0001>
module attributes {stable_mosaic.version = 11 : i64} {
  func.func @_attentive_kernel(%arg0: i32, %arg1: memref<4x256xf32, #tpu.memory_space<vmem>>, %arg2: memref<8x4xf32, #tpu.memory_space<vmem>>, %arg3: memref<8x1xf32, #tpu.memory_space<vmem>>, %arg4: memref<3x8xf32, #tpu.memory_space<vmem>>, %arg5: memref<9x8xf32, #tpu.memory_space<vmem>>, %arg6: memref<4x8xf32, #tpu.memory_space<vmem>>, %arg7: memref<4x1xf32, #tpu.memory_space<vmem>>, %arg8: memref<8x4xf32, #tpu.memory_space<vmem>>, %arg9: memref<8x1xf32, #tpu.memory_space<vmem>>, %arg10: memref<1xf32, #tpu.memory_space<smem>>, %arg11: memref<1xf32, #tpu.memory_space<smem>>, %arg12: memref<8x256xf32, #tpu.memory_space<vmem>>) attributes {dimension_semantics = [#tpu.dimension_semantics<parallel>], iteration_bounds = array<i64: 2>, scalar_prefetch = 0 : i64, scratch_operands = 0 : i64, tpu.core_type = #tpu.core_type<tc>, window_params = [{transform_indices = @transform_0, window_bounds = array<i64: 4, 256>}, {pipeline_mode = #tpu.pipeline_mode<synchronous>, transform_indices = @transform_1, window_bounds = array<i64: 8, 4>}, {pipeline_mode = #tpu.pipeline_mode<synchronous>, transform_indices = @transform_2, window_bounds = array<i64: 8, 1>}, {pipeline_mode = #tpu.pipeline_mode<synchronous>, transform_indices = @transform_3, window_bounds = array<i64: 3, 8>}, {pipeline_mode = #tpu.pipeline_mode<synchronous>, transform_indices = @transform_4, window_bounds = array<i64: 9, 8>}, {pipeline_mode = #tpu.pipeline_mode<synchronous>, transform_indices = @transform_5, window_bounds = array<i64: 4, 8>}, {pipeline_mode = #tpu.pipeline_mode<synchronous>, transform_indices = @transform_6, window_bounds = array<i64: 4, 1>}, {pipeline_mode = #tpu.pipeline_mode<synchronous>, transform_indices = @transform_7, window_bounds = array<i64: 8, 4>}, {pipeline_mode = #tpu.pipeline_mode<synchronous>, transform_indices = @transform_8, window_bounds = array<i64: 8, 1>}, {transform_indices = @transform_9, window_bounds = array<i64: 1>}, {transform_indices = @transform_10, window_bounds = array<i64: 1>}, {transform_indices = @transform_11, window_bounds = array<i64: 8, 256>}]} {
    %c0 = arith.constant 0 : index
    %c0_0 = arith.constant 0 : index
    %0 = vector.load %arg2[%c0, %c0_0] : memref<8x4xf32, #tpu.memory_space<vmem>>, vector<8x4xf32>
    %c0_1 = arith.constant 0 : index
    %c0_2 = arith.constant 0 : index
    %1 = vector.load %arg3[%c0_1, %c0_2] : memref<8x1xf32, #tpu.memory_space<vmem>>, vector<8x1xf32>
    %c0_3 = arith.constant 0 : index
    %c0_4 = arith.constant 0 : index
    %2 = vector.load %arg4[%c0_3, %c0_4] : memref<3x8xf32, #tpu.memory_space<vmem>>, vector<3x8xf32>
    %c0_5 = arith.constant 0 : index
    %c0_6 = arith.constant 0 : index
    %3 = vector.load %arg5[%c0_5, %c0_6] : memref<9x8xf32, #tpu.memory_space<vmem>>, vector<9x8xf32>
    %c0_7 = arith.constant 0 : index
    %c0_8 = arith.constant 0 : index
    %4 = vector.load %arg6[%c0_7, %c0_8] : memref<4x8xf32, #tpu.memory_space<vmem>>, vector<4x8xf32>
    %c0_9 = arith.constant 0 : index
    %c0_10 = arith.constant 0 : index
    %5 = vector.load %arg7[%c0_9, %c0_10] : memref<4x1xf32, #tpu.memory_space<vmem>>, vector<4x1xf32>
    %c0_11 = arith.constant 0 : index
    %c0_12 = arith.constant 0 : index
    %6 = vector.load %arg8[%c0_11, %c0_12] : memref<8x4xf32, #tpu.memory_space<vmem>>, vector<8x4xf32>
    %c0_13 = arith.constant 0 : index
    %c0_14 = arith.constant 0 : index
    %7 = vector.load %arg9[%c0_13, %c0_14] : memref<8x1xf32, #tpu.memory_space<vmem>>, vector<8x1xf32>
    %c0_15 = arith.constant 0 : index
    %8 = memref.load %arg10[%c0_15] : memref<1xf32, #tpu.memory_space<smem>>
    %c0_16 = arith.constant 0 : index
    %9 = memref.load %arg11[%c0_16] : memref<1xf32, #tpu.memory_space<smem>>
    %10 = tpu.iota {dimensions = array<i32: 1>} : vector<1x256xi32>
    %c255_i32 = arith.constant 255 : i32
    %11 = vector.broadcast %c255_i32 : i32 to vector<1x256xi32>
    %12 = arith.andi %10, %11 : vector<1x256xi32>
    %c4_i32 = arith.constant 4 : i32
    %13 = vector.broadcast %c4_i32 : i32 to vector<1x256xi32>
    %14 = arith.shrsi %12, %13 : vector<1x256xi32>
    %c15_i32 = arith.constant 15 : i32
    %15 = vector.broadcast %c15_i32 : i32 to vector<1x256xi32>
    %16 = arith.andi %12, %15 : vector<1x256xi32>
    %c1_i32 = arith.constant 1 : i32
    %17 = vector.broadcast %c1_i32 : i32 to vector<1x256xi32>
    %18 = arith.andi %10, %17 : vector<1x256xi32>
    %c0_i32 = arith.constant 0 : i32
    %19 = vector.broadcast %c0_i32 : i32 to vector<1x256xi32>
    %20 = arith.cmpi ne, %18, %19 : vector<1x256xi32>
    %c2_i32 = arith.constant 2 : i32
    %21 = vector.broadcast %c2_i32 : i32 to vector<1x256xi32>
    %22 = arith.andi %10, %21 : vector<1x256xi32>
    %c0_i32_17 = arith.constant 0 : i32
    %23 = vector.broadcast %c0_i32_17 : i32 to vector<1x256xi32>
    %24 = arith.cmpi ne, %22, %23 : vector<1x256xi32>
    %c4_i32_18 = arith.constant 4 : i32
    %25 = vector.broadcast %c4_i32_18 : i32 to vector<1x256xi32>
    %26 = arith.andi %10, %25 : vector<1x256xi32>
    %c0_i32_19 = arith.constant 0 : i32
    %27 = vector.broadcast %c0_i32_19 : i32 to vector<1x256xi32>
    %28 = arith.cmpi ne, %26, %27 : vector<1x256xi32>
    %c8_i32 = arith.constant 8 : i32
    %29 = vector.broadcast %c8_i32 : i32 to vector<1x256xi32>
    %30 = arith.andi %10, %29 : vector<1x256xi32>
    %c0_i32_20 = arith.constant 0 : i32
    %31 = vector.broadcast %c0_i32_20 : i32 to vector<1x256xi32>
    %32 = arith.cmpi ne, %30, %31 : vector<1x256xi32>
    %c16_i32 = arith.constant 16 : i32
    %33 = vector.broadcast %c16_i32 : i32 to vector<1x256xi32>
    %34 = arith.andi %10, %33 : vector<1x256xi32>
    %c0_i32_21 = arith.constant 0 : i32
    %35 = vector.broadcast %c0_i32_21 : i32 to vector<1x256xi32>
    %36 = arith.cmpi ne, %34, %35 : vector<1x256xi32>
    %c32_i32 = arith.constant 32 : i32
    %37 = vector.broadcast %c32_i32 : i32 to vector<1x256xi32>
    %38 = arith.andi %10, %37 : vector<1x256xi32>
    %c0_i32_22 = arith.constant 0 : i32
    %39 = vector.broadcast %c0_i32_22 : i32 to vector<1x256xi32>
    %40 = arith.cmpi ne, %38, %39 : vector<1x256xi32>
    %c64_i32 = arith.constant 64 : i32
    %41 = vector.broadcast %c64_i32 : i32 to vector<1x256xi32>
    %42 = arith.andi %10, %41 : vector<1x256xi32>
    %c0_i32_23 = arith.constant 0 : i32
    %43 = vector.broadcast %c0_i32_23 : i32 to vector<1x256xi32>
    %44 = arith.cmpi ne, %42, %43 : vector<1x256xi32>
    %c128_i32 = arith.constant 128 : i32
    %45 = vector.broadcast %c128_i32 : i32 to vector<1x256xi32>
    %46 = arith.andi %10, %45 : vector<1x256xi32>
    %c0_i32_24 = arith.constant 0 : i32
    %47 = vector.broadcast %c0_i32_24 : i32 to vector<1x256xi32>
    %48 = arith.cmpi ne, %46, %47 : vector<1x256xi32>
    %c-1_i32 = arith.constant -1 : i32
    %49 = vector.broadcast %c-1_i32 : i32 to vector<1x256xi32>
    %50 = arith.addi %14, %49 : vector<1x256xi32>
    %c0_i32_25 = arith.constant 0 : i32
    %51 = vector.broadcast %c0_i32_25 : i32 to vector<1x256xi32>
    %52 = arith.cmpi sge, %50, %51 : vector<1x256xi32>
    %c-1_i32_26 = arith.constant -1 : i32
    %53 = vector.broadcast %c-1_i32_26 : i32 to vector<1x256xi32>
    %54 = arith.addi %14, %53 : vector<1x256xi32>
    %c16_i32_27 = arith.constant 16 : i32
    %55 = vector.broadcast %c16_i32_27 : i32 to vector<1x256xi32>
    %56 = arith.cmpi slt, %54, %55 : vector<1x256xi32>
    %57 = arith.andi %52, %56 : vector<1x256xi1>
    %c0_i32_28 = arith.constant 0 : i32
    %58 = vector.broadcast %c0_i32_28 : i32 to vector<1x256xi32>
    %59 = arith.addi %14, %58 : vector<1x256xi32>
    %c0_i32_29 = arith.constant 0 : i32
    %60 = vector.broadcast %c0_i32_29 : i32 to vector<1x256xi32>
    %61 = arith.cmpi sge, %59, %60 : vector<1x256xi32>
    %c0_i32_30 = arith.constant 0 : i32
    %62 = vector.broadcast %c0_i32_30 : i32 to vector<1x256xi32>
    %63 = arith.addi %14, %62 : vector<1x256xi32>
    %c16_i32_31 = arith.constant 16 : i32
    %64 = vector.broadcast %c16_i32_31 : i32 to vector<1x256xi32>
    %65 = arith.cmpi slt, %63, %64 : vector<1x256xi32>
    %66 = arith.andi %61, %65 : vector<1x256xi1>
    %c1_i32_32 = arith.constant 1 : i32
    %67 = vector.broadcast %c1_i32_32 : i32 to vector<1x256xi32>
    %68 = arith.addi %14, %67 : vector<1x256xi32>
    %c0_i32_33 = arith.constant 0 : i32
    %69 = vector.broadcast %c0_i32_33 : i32 to vector<1x256xi32>
    %70 = arith.cmpi sge, %68, %69 : vector<1x256xi32>
    %c1_i32_34 = arith.constant 1 : i32
    %71 = vector.broadcast %c1_i32_34 : i32 to vector<1x256xi32>
    %72 = arith.addi %14, %71 : vector<1x256xi32>
    %c16_i32_35 = arith.constant 16 : i32
    %73 = vector.broadcast %c16_i32_35 : i32 to vector<1x256xi32>
    %74 = arith.cmpi slt, %72, %73 : vector<1x256xi32>
    %75 = arith.andi %70, %74 : vector<1x256xi1>
    %c-4_i32 = arith.constant -4 : i32
    %76 = vector.broadcast %c-4_i32 : i32 to vector<1x256xi32>
    %77 = arith.addi %16, %76 : vector<1x256xi32>
    %c0_i32_36 = arith.constant 0 : i32
    %78 = vector.broadcast %c0_i32_36 : i32 to vector<1x256xi32>
    %79 = arith.cmpi sge, %77, %78 : vector<1x256xi32>
    %c-4_i32_37 = arith.constant -4 : i32
    %80 = vector.broadcast %c-4_i32_37 : i32 to vector<1x256xi32>
    %81 = arith.addi %16, %80 : vector<1x256xi32>
    %c16_i32_38 = arith.constant 16 : i32
    %82 = vector.broadcast %c16_i32_38 : i32 to vector<1x256xi32>
    %83 = arith.cmpi slt, %81, %82 : vector<1x256xi32>
    %84 = arith.andi %79, %83 : vector<1x256xi1>
    %c-3_i32 = arith.constant -3 : i32
    %85 = vector.broadcast %c-3_i32 : i32 to vector<1x256xi32>
    %86 = arith.addi %16, %85 : vector<1x256xi32>
    %c0_i32_39 = arith.constant 0 : i32
    %87 = vector.broadcast %c0_i32_39 : i32 to vector<1x256xi32>
    %88 = arith.cmpi sge, %86, %87 : vector<1x256xi32>
    %c-3_i32_40 = arith.constant -3 : i32
    %89 = vector.broadcast %c-3_i32_40 : i32 to vector<1x256xi32>
    %90 = arith.addi %16, %89 : vector<1x256xi32>
    %c16_i32_41 = arith.constant 16 : i32
    %91 = vector.broadcast %c16_i32_41 : i32 to vector<1x256xi32>
    %92 = arith.cmpi slt, %90, %91 : vector<1x256xi32>
    %93 = arith.andi %88, %92 : vector<1x256xi1>
    %c-2_i32 = arith.constant -2 : i32
    %94 = vector.broadcast %c-2_i32 : i32 to vector<1x256xi32>
    %95 = arith.addi %16, %94 : vector<1x256xi32>
    %c0_i32_42 = arith.constant 0 : i32
    %96 = vector.broadcast %c0_i32_42 : i32 to vector<1x256xi32>
    %97 = arith.cmpi sge, %95, %96 : vector<1x256xi32>
    %c-2_i32_43 = arith.constant -2 : i32
    %98 = vector.broadcast %c-2_i32_43 : i32 to vector<1x256xi32>
    %99 = arith.addi %16, %98 : vector<1x256xi32>
    %c16_i32_44 = arith.constant 16 : i32
    %100 = vector.broadcast %c16_i32_44 : i32 to vector<1x256xi32>
    %101 = arith.cmpi slt, %99, %100 : vector<1x256xi32>
    %102 = arith.andi %97, %101 : vector<1x256xi1>
    %c-1_i32_45 = arith.constant -1 : i32
    %103 = vector.broadcast %c-1_i32_45 : i32 to vector<1x256xi32>
    %104 = arith.addi %16, %103 : vector<1x256xi32>
    %c0_i32_46 = arith.constant 0 : i32
    %105 = vector.broadcast %c0_i32_46 : i32 to vector<1x256xi32>
    %106 = arith.cmpi sge, %104, %105 : vector<1x256xi32>
    %c-1_i32_47 = arith.constant -1 : i32
    %107 = vector.broadcast %c-1_i32_47 : i32 to vector<1x256xi32>
    %108 = arith.addi %16, %107 : vector<1x256xi32>
    %c16_i32_48 = arith.constant 16 : i32
    %109 = vector.broadcast %c16_i32_48 : i32 to vector<1x256xi32>
    %110 = arith.cmpi slt, %108, %109 : vector<1x256xi32>
    %111 = arith.andi %106, %110 : vector<1x256xi1>
    %c0_i32_49 = arith.constant 0 : i32
    %112 = vector.broadcast %c0_i32_49 : i32 to vector<1x256xi32>
    %113 = arith.addi %16, %112 : vector<1x256xi32>
    %c0_i32_50 = arith.constant 0 : i32
    %114 = vector.broadcast %c0_i32_50 : i32 to vector<1x256xi32>
    %115 = arith.cmpi sge, %113, %114 : vector<1x256xi32>
    %c0_i32_51 = arith.constant 0 : i32
    %116 = vector.broadcast %c0_i32_51 : i32 to vector<1x256xi32>
    %117 = arith.addi %16, %116 : vector<1x256xi32>
    %c16_i32_52 = arith.constant 16 : i32
    %118 = vector.broadcast %c16_i32_52 : i32 to vector<1x256xi32>
    %119 = arith.cmpi slt, %117, %118 : vector<1x256xi32>
    %120 = arith.andi %115, %119 : vector<1x256xi1>
    %c1_i32_53 = arith.constant 1 : i32
    %121 = vector.broadcast %c1_i32_53 : i32 to vector<1x256xi32>
    %122 = arith.addi %16, %121 : vector<1x256xi32>
    %c0_i32_54 = arith.constant 0 : i32
    %123 = vector.broadcast %c0_i32_54 : i32 to vector<1x256xi32>
    %124 = arith.cmpi sge, %122, %123 : vector<1x256xi32>
    %c1_i32_55 = arith.constant 1 : i32
    %125 = vector.broadcast %c1_i32_55 : i32 to vector<1x256xi32>
    %126 = arith.addi %16, %125 : vector<1x256xi32>
    %c16_i32_56 = arith.constant 16 : i32
    %127 = vector.broadcast %c16_i32_56 : i32 to vector<1x256xi32>
    %128 = arith.cmpi slt, %126, %127 : vector<1x256xi32>
    %129 = arith.andi %124, %128 : vector<1x256xi1>
    %c2_i32_57 = arith.constant 2 : i32
    %130 = vector.broadcast %c2_i32_57 : i32 to vector<1x256xi32>
    %131 = arith.addi %16, %130 : vector<1x256xi32>
    %c0_i32_58 = arith.constant 0 : i32
    %132 = vector.broadcast %c0_i32_58 : i32 to vector<1x256xi32>
    %133 = arith.cmpi sge, %131, %132 : vector<1x256xi32>
    %c2_i32_59 = arith.constant 2 : i32
    %134 = vector.broadcast %c2_i32_59 : i32 to vector<1x256xi32>
    %135 = arith.addi %16, %134 : vector<1x256xi32>
    %c16_i32_60 = arith.constant 16 : i32
    %136 = vector.broadcast %c16_i32_60 : i32 to vector<1x256xi32>
    %137 = arith.cmpi slt, %135, %136 : vector<1x256xi32>
    %138 = arith.andi %133, %137 : vector<1x256xi1>
    %c3_i32 = arith.constant 3 : i32
    %139 = vector.broadcast %c3_i32 : i32 to vector<1x256xi32>
    %140 = arith.addi %16, %139 : vector<1x256xi32>
    %c0_i32_61 = arith.constant 0 : i32
    %141 = vector.broadcast %c0_i32_61 : i32 to vector<1x256xi32>
    %142 = arith.cmpi sge, %140, %141 : vector<1x256xi32>
    %c3_i32_62 = arith.constant 3 : i32
    %143 = vector.broadcast %c3_i32_62 : i32 to vector<1x256xi32>
    %144 = arith.addi %16, %143 : vector<1x256xi32>
    %c16_i32_63 = arith.constant 16 : i32
    %145 = vector.broadcast %c16_i32_63 : i32 to vector<1x256xi32>
    %146 = arith.cmpi slt, %144, %145 : vector<1x256xi32>
    %147 = arith.andi %142, %146 : vector<1x256xi1>
    %c4_i32_64 = arith.constant 4 : i32
    %148 = vector.broadcast %c4_i32_64 : i32 to vector<1x256xi32>
    %149 = arith.addi %16, %148 : vector<1x256xi32>
    %c0_i32_65 = arith.constant 0 : i32
    %150 = vector.broadcast %c0_i32_65 : i32 to vector<1x256xi32>
    %151 = arith.cmpi sge, %149, %150 : vector<1x256xi32>
    %c4_i32_66 = arith.constant 4 : i32
    %152 = vector.broadcast %c4_i32_66 : i32 to vector<1x256xi32>
    %153 = arith.addi %16, %152 : vector<1x256xi32>
    %c16_i32_67 = arith.constant 16 : i32
    %154 = vector.broadcast %c16_i32_67 : i32 to vector<1x256xi32>
    %155 = arith.cmpi slt, %153, %154 : vector<1x256xi32>
    %156 = arith.andi %151, %155 : vector<1x256xi1>
    %c0_68 = arith.constant 0 : index
    %c0_69 = arith.constant 0 : index
    %157 = vector.load %arg1[%c0_68, %c0_69] : memref<4x256xf32, #tpu.memory_space<vmem>>, vector<4x256xf32>
    %cst = arith.constant dense<0.000000e+00> : vector<8x256xf32>
    %158 = tpu.matmul %0, %157, %cst {dimension_numbers = #tpu.dot_dimension_numbers<[1], [0], [0], [1], [0, 0, 1, 1], [], []>} : vector<8x4xf32>, vector<4x256xf32>, vector<8x256xf32> -> vector<8x256xf32>
    %159 = vector.broadcast %1 : vector<8x1xf32> to vector<8x256xf32>
    %160 = arith.addf %158, %159 : vector<8x256xf32>
    %c255_i32_70 = arith.constant 255 : i32
    %161 = tpu.dynamic_rotate %160 by %c255_i32_70 dim 1 : vector<8x256xf32>, i32 -> vector<8x256xf32>
    %162 = arith.addf %160, %161 : vector<8x256xf32>
    %c254_i32 = arith.constant 254 : i32
    %163 = tpu.dynamic_rotate %162 by %c254_i32 dim 1 : vector<8x256xf32>, i32 -> vector<8x256xf32>
    %164 = arith.addf %162, %163 : vector<8x256xf32>
    %c252_i32 = arith.constant 252 : i32
    %165 = tpu.dynamic_rotate %164 by %c252_i32 dim 1 : vector<8x256xf32>, i32 -> vector<8x256xf32>
    %166 = arith.addf %164, %165 : vector<8x256xf32>
    %c248_i32 = arith.constant 248 : i32
    %167 = tpu.dynamic_rotate %166 by %c248_i32 dim 1 : vector<8x256xf32>, i32 -> vector<8x256xf32>
    %168 = arith.addf %166, %167 : vector<8x256xf32>
    %cst_71 = arith.constant 6.250000e-02 : f32
    %169 = vector.broadcast %cst_71 : f32 to vector<8x256xf32>
    %170 = arith.mulf %168, %169 : vector<8x256xf32>
    %cst_72 = arith.constant dense<0.000000e+00> : vector<3x256xf32>
    %171 = tpu.matmul %2, %170, %cst_72 {dimension_numbers = #tpu.dot_dimension_numbers<[1], [0], [0], [1], [0, 0, 1, 1], [], []>} : vector<3x8xf32>, vector<8x256xf32>, vector<3x256xf32> -> vector<3x256xf32>
    %cst_73 = arith.constant 0.000000e+00 : f32
    %172 = vector.broadcast %cst_73 : f32 to vector<1x256xf32>
    %173 = vector.extract_strided_slice %171 {offsets = [0, 0], sizes = [1, 256], strides = [1, 1]} : vector<3x256xf32> to vector<1x256xf32>
    %c16_i32_74 = arith.constant 16 : i32
    %174 = tpu.dynamic_rotate %173 by %c16_i32_74 dim 1 : vector<1x256xf32>, i32 -> vector<1x256xf32>
    %cst_75 = arith.constant 0.000000e+00 : f32
    %175 = vector.broadcast %cst_75 : f32 to vector<1x256xf32>
    %176 = arith.select %57, %174, %175 : vector<1x256xi1>, vector<1x256xf32>
    %177 = arith.addf %172, %176 : vector<1x256xf32>
    %178 = vector.extract_strided_slice %171 {offsets = [1, 0], sizes = [1, 256], strides = [1, 1]} : vector<3x256xf32> to vector<1x256xf32>
    %cst_76 = arith.constant 0.000000e+00 : f32
    %179 = vector.broadcast %cst_76 : f32 to vector<1x256xf32>
    %180 = arith.select %66, %178, %179 : vector<1x256xi1>, vector<1x256xf32>
    %181 = arith.addf %177, %180 : vector<1x256xf32>
    %182 = vector.extract_strided_slice %171 {offsets = [2, 0], sizes = [1, 256], strides = [1, 1]} : vector<3x256xf32> to vector<1x256xf32>
    %c240_i32 = arith.constant 240 : i32
    %183 = tpu.dynamic_rotate %182 by %c240_i32 dim 1 : vector<1x256xf32>, i32 -> vector<1x256xf32>
    %cst_77 = arith.constant 0.000000e+00 : f32
    %184 = vector.broadcast %cst_77 : f32 to vector<1x256xf32>
    %185 = arith.select %75, %183, %184 : vector<1x256xi1>, vector<1x256xf32>
    %186 = arith.addf %181, %185 : vector<1x256xf32>
    %187 = vector.broadcast %8 : f32 to vector<1x256xf32>
    %188 = arith.addf %186, %187 : vector<1x256xf32>
    %189 = arith.negf %188 : vector<1x256xf32>
    %190 = math.exp %189 : vector<1x256xf32>
    %cst_78 = arith.constant 1.000000e+00 : f32
    %191 = vector.broadcast %cst_78 : f32 to vector<1x256xf32>
    %192 = arith.addf %191, %190 : vector<1x256xf32>
    %193 = arith.divf %191, %192 : vector<1x256xf32>
    %c1_i32_79 = arith.constant 1 : i32
    %194 = tpu.dynamic_rotate %193 by %c1_i32_79 dim 1 : vector<1x256xf32>, i32 -> vector<1x256xf32>
    %195 = arith.select %20, %194, %193 : vector<1x256xi1>, vector<1x256xf32>
    %c2_i32_80 = arith.constant 2 : i32
    %196 = tpu.dynamic_rotate %195 by %c2_i32_80 dim 1 : vector<1x256xf32>, i32 -> vector<1x256xf32>
    %197 = arith.select %24, %196, %195 : vector<1x256xi1>, vector<1x256xf32>
    %c4_i32_81 = arith.constant 4 : i32
    %198 = tpu.dynamic_rotate %197 by %c4_i32_81 dim 1 : vector<1x256xf32>, i32 -> vector<1x256xf32>
    %199 = arith.select %28, %198, %197 : vector<1x256xi1>, vector<1x256xf32>
    %c8_i32_82 = arith.constant 8 : i32
    %200 = tpu.dynamic_rotate %199 by %c8_i32_82 dim 1 : vector<1x256xf32>, i32 -> vector<1x256xf32>
    %201 = arith.select %32, %200, %199 : vector<1x256xi1>, vector<1x256xf32>
    %cst_83 = arith.constant 1.000000e+00 : f32
    %202 = vector.broadcast %cst_83 : f32 to vector<1x256xf32>
    %203 = arith.addf %201, %202 : vector<1x256xf32>
    %204 = vector.broadcast %203 : vector<1x256xf32> to vector<8x256xf32>
    %205 = arith.mulf %160, %204 : vector<8x256xf32>
    %c240_i32_84 = arith.constant 240 : i32
    %206 = tpu.dynamic_rotate %205 by %c240_i32_84 dim 1 : vector<8x256xf32>, i32 -> vector<8x256xf32>
    %207 = arith.addf %205, %206 : vector<8x256xf32>
    %c224_i32 = arith.constant 224 : i32
    %208 = tpu.dynamic_rotate %207 by %c224_i32 dim 1 : vector<8x256xf32>, i32 -> vector<8x256xf32>
    %209 = arith.addf %207, %208 : vector<8x256xf32>
    %c192_i32 = arith.constant 192 : i32
    %210 = tpu.dynamic_rotate %209 by %c192_i32 dim 1 : vector<8x256xf32>, i32 -> vector<8x256xf32>
    %211 = arith.addf %209, %210 : vector<8x256xf32>
    %c128_i32_85 = arith.constant 128 : i32
    %212 = tpu.dynamic_rotate %211 by %c128_i32_85 dim 1 : vector<8x256xf32>, i32 -> vector<8x256xf32>
    %213 = arith.addf %211, %212 : vector<8x256xf32>
    %cst_86 = arith.constant 6.250000e-02 : f32
    %214 = vector.broadcast %cst_86 : f32 to vector<8x256xf32>
    %215 = arith.mulf %213, %214 : vector<8x256xf32>
    %cst_87 = arith.constant dense<0.000000e+00> : vector<9x256xf32>
    %216 = tpu.matmul %3, %215, %cst_87 {dimension_numbers = #tpu.dot_dimension_numbers<[1], [0], [0], [1], [0, 0, 1, 1], [], []>} : vector<9x8xf32>, vector<8x256xf32>, vector<9x256xf32> -> vector<9x256xf32>
    %cst_88 = arith.constant 0.000000e+00 : f32
    %217 = vector.broadcast %cst_88 : f32 to vector<1x256xf32>
    %218 = vector.extract_strided_slice %216 {offsets = [0, 0], sizes = [1, 256], strides = [1, 1]} : vector<9x256xf32> to vector<1x256xf32>
    %c4_i32_89 = arith.constant 4 : i32
    %219 = tpu.dynamic_rotate %218 by %c4_i32_89 dim 1 : vector<1x256xf32>, i32 -> vector<1x256xf32>
    %cst_90 = arith.constant 0.000000e+00 : f32
    %220 = vector.broadcast %cst_90 : f32 to vector<1x256xf32>
    %221 = arith.select %84, %219, %220 : vector<1x256xi1>, vector<1x256xf32>
    %222 = arith.addf %217, %221 : vector<1x256xf32>
    %223 = vector.extract_strided_slice %216 {offsets = [1, 0], sizes = [1, 256], strides = [1, 1]} : vector<9x256xf32> to vector<1x256xf32>
    %c3_i32_91 = arith.constant 3 : i32
    %224 = tpu.dynamic_rotate %223 by %c3_i32_91 dim 1 : vector<1x256xf32>, i32 -> vector<1x256xf32>
    %cst_92 = arith.constant 0.000000e+00 : f32
    %225 = vector.broadcast %cst_92 : f32 to vector<1x256xf32>
    %226 = arith.select %93, %224, %225 : vector<1x256xi1>, vector<1x256xf32>
    %227 = arith.addf %222, %226 : vector<1x256xf32>
    %228 = vector.extract_strided_slice %216 {offsets = [2, 0], sizes = [1, 256], strides = [1, 1]} : vector<9x256xf32> to vector<1x256xf32>
    %c2_i32_93 = arith.constant 2 : i32
    %229 = tpu.dynamic_rotate %228 by %c2_i32_93 dim 1 : vector<1x256xf32>, i32 -> vector<1x256xf32>
    %cst_94 = arith.constant 0.000000e+00 : f32
    %230 = vector.broadcast %cst_94 : f32 to vector<1x256xf32>
    %231 = arith.select %102, %229, %230 : vector<1x256xi1>, vector<1x256xf32>
    %232 = arith.addf %227, %231 : vector<1x256xf32>
    %233 = vector.extract_strided_slice %216 {offsets = [3, 0], sizes = [1, 256], strides = [1, 1]} : vector<9x256xf32> to vector<1x256xf32>
    %c1_i32_95 = arith.constant 1 : i32
    %234 = tpu.dynamic_rotate %233 by %c1_i32_95 dim 1 : vector<1x256xf32>, i32 -> vector<1x256xf32>
    %cst_96 = arith.constant 0.000000e+00 : f32
    %235 = vector.broadcast %cst_96 : f32 to vector<1x256xf32>
    %236 = arith.select %111, %234, %235 : vector<1x256xi1>, vector<1x256xf32>
    %237 = arith.addf %232, %236 : vector<1x256xf32>
    %238 = vector.extract_strided_slice %216 {offsets = [4, 0], sizes = [1, 256], strides = [1, 1]} : vector<9x256xf32> to vector<1x256xf32>
    %cst_97 = arith.constant 0.000000e+00 : f32
    %239 = vector.broadcast %cst_97 : f32 to vector<1x256xf32>
    %240 = arith.select %120, %238, %239 : vector<1x256xi1>, vector<1x256xf32>
    %241 = arith.addf %237, %240 : vector<1x256xf32>
    %242 = vector.extract_strided_slice %216 {offsets = [5, 0], sizes = [1, 256], strides = [1, 1]} : vector<9x256xf32> to vector<1x256xf32>
    %c255_i32_98 = arith.constant 255 : i32
    %243 = tpu.dynamic_rotate %242 by %c255_i32_98 dim 1 : vector<1x256xf32>, i32 -> vector<1x256xf32>
    %cst_99 = arith.constant 0.000000e+00 : f32
    %244 = vector.broadcast %cst_99 : f32 to vector<1x256xf32>
    %245 = arith.select %129, %243, %244 : vector<1x256xi1>, vector<1x256xf32>
    %246 = arith.addf %241, %245 : vector<1x256xf32>
    %247 = vector.extract_strided_slice %216 {offsets = [6, 0], sizes = [1, 256], strides = [1, 1]} : vector<9x256xf32> to vector<1x256xf32>
    %c254_i32_100 = arith.constant 254 : i32
    %248 = tpu.dynamic_rotate %247 by %c254_i32_100 dim 1 : vector<1x256xf32>, i32 -> vector<1x256xf32>
    %cst_101 = arith.constant 0.000000e+00 : f32
    %249 = vector.broadcast %cst_101 : f32 to vector<1x256xf32>
    %250 = arith.select %138, %248, %249 : vector<1x256xi1>, vector<1x256xf32>
    %251 = arith.addf %246, %250 : vector<1x256xf32>
    %252 = vector.extract_strided_slice %216 {offsets = [7, 0], sizes = [1, 256], strides = [1, 1]} : vector<9x256xf32> to vector<1x256xf32>
    %c253_i32 = arith.constant 253 : i32
    %253 = tpu.dynamic_rotate %252 by %c253_i32 dim 1 : vector<1x256xf32>, i32 -> vector<1x256xf32>
    %cst_102 = arith.constant 0.000000e+00 : f32
    %254 = vector.broadcast %cst_102 : f32 to vector<1x256xf32>
    %255 = arith.select %147, %253, %254 : vector<1x256xi1>, vector<1x256xf32>
    %256 = arith.addf %251, %255 : vector<1x256xf32>
    %257 = vector.extract_strided_slice %216 {offsets = [8, 0], sizes = [1, 256], strides = [1, 1]} : vector<9x256xf32> to vector<1x256xf32>
    %c252_i32_103 = arith.constant 252 : i32
    %258 = tpu.dynamic_rotate %257 by %c252_i32_103 dim 1 : vector<1x256xf32>, i32 -> vector<1x256xf32>
    %cst_104 = arith.constant 0.000000e+00 : f32
    %259 = vector.broadcast %cst_104 : f32 to vector<1x256xf32>
    %260 = arith.select %156, %258, %259 : vector<1x256xi1>, vector<1x256xf32>
    %261 = arith.addf %256, %260 : vector<1x256xf32>
    %262 = vector.broadcast %9 : f32 to vector<1x256xf32>
    %263 = arith.addf %261, %262 : vector<1x256xf32>
    %264 = arith.negf %263 : vector<1x256xf32>
    %265 = math.exp %264 : vector<1x256xf32>
    %cst_105 = arith.constant 1.000000e+00 : f32
    %266 = vector.broadcast %cst_105 : f32 to vector<1x256xf32>
    %267 = arith.addf %266, %265 : vector<1x256xf32>
    %268 = arith.divf %266, %267 : vector<1x256xf32>
    %c16_i32_106 = arith.constant 16 : i32
    %269 = tpu.dynamic_rotate %268 by %c16_i32_106 dim 1 : vector<1x256xf32>, i32 -> vector<1x256xf32>
    %270 = arith.select %36, %269, %268 : vector<1x256xi1>, vector<1x256xf32>
    %c32_i32_107 = arith.constant 32 : i32
    %271 = tpu.dynamic_rotate %270 by %c32_i32_107 dim 1 : vector<1x256xf32>, i32 -> vector<1x256xf32>
    %272 = arith.select %40, %271, %270 : vector<1x256xi1>, vector<1x256xf32>
    %c64_i32_108 = arith.constant 64 : i32
    %273 = tpu.dynamic_rotate %272 by %c64_i32_108 dim 1 : vector<1x256xf32>, i32 -> vector<1x256xf32>
    %274 = arith.select %44, %273, %272 : vector<1x256xi1>, vector<1x256xf32>
    %c128_i32_109 = arith.constant 128 : i32
    %275 = tpu.dynamic_rotate %274 by %c128_i32_109 dim 1 : vector<1x256xf32>, i32 -> vector<1x256xf32>
    %276 = arith.select %48, %275, %274 : vector<1x256xi1>, vector<1x256xf32>
    %cst_110 = arith.constant 1.000000e+00 : f32
    %277 = vector.broadcast %cst_110 : f32 to vector<1x256xf32>
    %278 = arith.addf %276, %277 : vector<1x256xf32>
    %279 = vector.broadcast %278 : vector<1x256xf32> to vector<8x256xf32>
    %280 = arith.mulf %205, %279 : vector<8x256xf32>
    %c255_i32_111 = arith.constant 255 : i32
    %281 = tpu.dynamic_rotate %280 by %c255_i32_111 dim 1 : vector<8x256xf32>, i32 -> vector<8x256xf32>
    %282 = arith.addf %280, %281 : vector<8x256xf32>
    %c254_i32_112 = arith.constant 254 : i32
    %283 = tpu.dynamic_rotate %282 by %c254_i32_112 dim 1 : vector<8x256xf32>, i32 -> vector<8x256xf32>
    %284 = arith.addf %282, %283 : vector<8x256xf32>
    %c252_i32_113 = arith.constant 252 : i32
    %285 = tpu.dynamic_rotate %284 by %c252_i32_113 dim 1 : vector<8x256xf32>, i32 -> vector<8x256xf32>
    %286 = arith.addf %284, %285 : vector<8x256xf32>
    %c248_i32_114 = arith.constant 248 : i32
    %287 = tpu.dynamic_rotate %286 by %c248_i32_114 dim 1 : vector<8x256xf32>, i32 -> vector<8x256xf32>
    %288 = arith.addf %286, %287 : vector<8x256xf32>
    %c240_i32_115 = arith.constant 240 : i32
    %289 = tpu.dynamic_rotate %288 by %c240_i32_115 dim 1 : vector<8x256xf32>, i32 -> vector<8x256xf32>
    %290 = arith.addf %288, %289 : vector<8x256xf32>
    %c224_i32_116 = arith.constant 224 : i32
    %291 = tpu.dynamic_rotate %290 by %c224_i32_116 dim 1 : vector<8x256xf32>, i32 -> vector<8x256xf32>
    %292 = arith.addf %290, %291 : vector<8x256xf32>
    %c192_i32_117 = arith.constant 192 : i32
    %293 = tpu.dynamic_rotate %292 by %c192_i32_117 dim 1 : vector<8x256xf32>, i32 -> vector<8x256xf32>
    %294 = arith.addf %292, %293 : vector<8x256xf32>
    %c128_i32_118 = arith.constant 128 : i32
    %295 = tpu.dynamic_rotate %294 by %c128_i32_118 dim 1 : vector<8x256xf32>, i32 -> vector<8x256xf32>
    %296 = arith.addf %294, %295 : vector<8x256xf32>
    %cst_119 = arith.constant 3.906250e-03 : f32
    %297 = vector.broadcast %cst_119 : f32 to vector<8x256xf32>
    %298 = arith.mulf %296, %297 : vector<8x256xf32>
    %cst_120 = arith.constant dense<0.000000e+00> : vector<4x256xf32>
    %299 = tpu.matmul %4, %298, %cst_120 {dimension_numbers = #tpu.dot_dimension_numbers<[1], [0], [0], [1], [0, 0, 1, 1], [], []>} : vector<4x8xf32>, vector<8x256xf32>, vector<4x256xf32> -> vector<4x256xf32>
    %300 = vector.broadcast %5 : vector<4x1xf32> to vector<4x256xf32>
    %301 = arith.addf %299, %300 : vector<4x256xf32>
    %cst_121 = arith.constant 0.000000e+00 : f32
    %302 = vector.broadcast %cst_121 : f32 to vector<4x256xf32>
    %303 = arith.maximumf %301, %302 : vector<4x256xf32>
    %c1_i32_122 = arith.constant 1 : i32
    %304 = tpu.dynamic_rotate %303 by %c1_i32_122 dim 1 : vector<4x256xf32>, i32 -> vector<4x256xf32>
    %305 = vector.shape_cast %20 : vector<1x256xi1> to vector<1x256xi1>
    %306 = vector.broadcast %305 : vector<1x256xi1> to vector<4x256xi1>
    %307 = arith.select %306, %304, %303 : vector<4x256xi1>, vector<4x256xf32>
    %c2_i32_123 = arith.constant 2 : i32
    %308 = tpu.dynamic_rotate %307 by %c2_i32_123 dim 1 : vector<4x256xf32>, i32 -> vector<4x256xf32>
    %309 = vector.shape_cast %24 : vector<1x256xi1> to vector<1x256xi1>
    %310 = vector.broadcast %309 : vector<1x256xi1> to vector<4x256xi1>
    %311 = arith.select %310, %308, %307 : vector<4x256xi1>, vector<4x256xf32>
    %c4_i32_124 = arith.constant 4 : i32
    %312 = tpu.dynamic_rotate %311 by %c4_i32_124 dim 1 : vector<4x256xf32>, i32 -> vector<4x256xf32>
    %313 = vector.shape_cast %28 : vector<1x256xi1> to vector<1x256xi1>
    %314 = vector.broadcast %313 : vector<1x256xi1> to vector<4x256xi1>
    %315 = arith.select %314, %312, %311 : vector<4x256xi1>, vector<4x256xf32>
    %c8_i32_125 = arith.constant 8 : i32
    %316 = tpu.dynamic_rotate %315 by %c8_i32_125 dim 1 : vector<4x256xf32>, i32 -> vector<4x256xf32>
    %317 = vector.shape_cast %32 : vector<1x256xi1> to vector<1x256xi1>
    %318 = vector.broadcast %317 : vector<1x256xi1> to vector<4x256xi1>
    %319 = arith.select %318, %316, %315 : vector<4x256xi1>, vector<4x256xf32>
    %c16_i32_126 = arith.constant 16 : i32
    %320 = tpu.dynamic_rotate %319 by %c16_i32_126 dim 1 : vector<4x256xf32>, i32 -> vector<4x256xf32>
    %321 = vector.shape_cast %36 : vector<1x256xi1> to vector<1x256xi1>
    %322 = vector.broadcast %321 : vector<1x256xi1> to vector<4x256xi1>
    %323 = arith.select %322, %320, %319 : vector<4x256xi1>, vector<4x256xf32>
    %c32_i32_127 = arith.constant 32 : i32
    %324 = tpu.dynamic_rotate %323 by %c32_i32_127 dim 1 : vector<4x256xf32>, i32 -> vector<4x256xf32>
    %325 = vector.shape_cast %40 : vector<1x256xi1> to vector<1x256xi1>
    %326 = vector.broadcast %325 : vector<1x256xi1> to vector<4x256xi1>
    %327 = arith.select %326, %324, %323 : vector<4x256xi1>, vector<4x256xf32>
    %c64_i32_128 = arith.constant 64 : i32
    %328 = tpu.dynamic_rotate %327 by %c64_i32_128 dim 1 : vector<4x256xf32>, i32 -> vector<4x256xf32>
    %329 = vector.shape_cast %44 : vector<1x256xi1> to vector<1x256xi1>
    %330 = vector.broadcast %329 : vector<1x256xi1> to vector<4x256xi1>
    %331 = arith.select %330, %328, %327 : vector<4x256xi1>, vector<4x256xf32>
    %c128_i32_129 = arith.constant 128 : i32
    %332 = tpu.dynamic_rotate %331 by %c128_i32_129 dim 1 : vector<4x256xf32>, i32 -> vector<4x256xf32>
    %333 = vector.shape_cast %48 : vector<1x256xi1> to vector<1x256xi1>
    %334 = vector.broadcast %333 : vector<1x256xi1> to vector<4x256xi1>
    %335 = arith.select %334, %332, %331 : vector<4x256xi1>, vector<4x256xf32>
    %cst_130 = arith.constant dense<0.000000e+00> : vector<8x256xf32>
    %336 = tpu.matmul %6, %335, %cst_130 {dimension_numbers = #tpu.dot_dimension_numbers<[1], [0], [0], [1], [0, 0, 1, 1], [], []>} : vector<8x4xf32>, vector<4x256xf32>, vector<8x256xf32> -> vector<8x256xf32>
    %337 = vector.broadcast %7 : vector<8x1xf32> to vector<8x256xf32>
    %338 = arith.addf %336, %337 : vector<8x256xf32>
    %339 = arith.negf %338 : vector<8x256xf32>
    %340 = math.exp %339 : vector<8x256xf32>
    %cst_131 = arith.constant 1.000000e+00 : f32
    %341 = vector.broadcast %cst_131 : f32 to vector<8x256xf32>
    %342 = arith.addf %341, %340 : vector<8x256xf32>
    %343 = arith.divf %341, %342 : vector<8x256xf32>
    %cst_132 = arith.constant 1.000000e+00 : f32
    %344 = vector.broadcast %cst_132 : f32 to vector<8x256xf32>
    %345 = arith.addf %343, %344 : vector<8x256xf32>
    %346 = arith.mulf %280, %345 : vector<8x256xf32>
    %c0_133 = arith.constant 0 : index
    %c0_134 = arith.constant 0 : index
    %347 = vector.load %arg12[%c0_133, %c0_134] : memref<8x256xf32, #tpu.memory_space<vmem>>, vector<8x256xf32>
    tpu.vector_store %arg12[%c0_133, %c0_134], %346 {strides = array<i32>} : memref<8x256xf32, #tpu.memory_space<vmem>>, vector<8x256xf32>,
    return
  }
  func.func @transform_0(%arg0: i32) -> (i32, i32) {
    %c0_i32 = arith.constant 0 : i32
    %c0_i32_0 = arith.constant 0 : i32
    return %c0_i32, %arg0 : i32, i32
  }
  func.func @transform_1(%arg0: i32) -> (i32, i32) {
    %c0_i32 = arith.constant 0 : i32
    %c0_i32_0 = arith.constant 0 : i32
    %c0_i32_1 = arith.constant 0 : i32
    return %c0_i32, %c0_i32_0 : i32, i32
  }
  func.func @transform_2(%arg0: i32) -> (i32, i32) {
    %c0_i32 = arith.constant 0 : i32
    %c0_i32_0 = arith.constant 0 : i32
    %c0_i32_1 = arith.constant 0 : i32
    return %c0_i32, %c0_i32_0 : i32, i32
  }
  func.func @transform_3(%arg0: i32) -> (i32, i32) {
    %c0_i32 = arith.constant 0 : i32
    %c0_i32_0 = arith.constant 0 : i32
    %c0_i32_1 = arith.constant 0 : i32
    return %c0_i32, %c0_i32_0 : i32, i32
  }
  func.func @transform_4(%arg0: i32) -> (i32, i32) {
    %c0_i32 = arith.constant 0 : i32
    %c0_i32_0 = arith.constant 0 : i32
    %c0_i32_1 = arith.constant 0 : i32
    return %c0_i32, %c0_i32_0 : i32, i32
  }
  func.func @transform_5(%arg0: i32) -> (i32, i32) {
    %c0_i32 = arith.constant 0 : i32
    %c0_i32_0 = arith.constant 0 : i32
    %c0_i32_1 = arith.constant 0 : i32
    return %c0_i32, %c0_i32_0 : i32, i32
  }
  func.func @transform_6(%arg0: i32) -> (i32, i32) {
    %c0_i32 = arith.constant 0 : i32
    %c0_i32_0 = arith.constant 0 : i32
    %c0_i32_1 = arith.constant 0 : i32
    return %c0_i32, %c0_i32_0 : i32, i32
  }
  func.func @transform_7(%arg0: i32) -> (i32, i32) {
    %c0_i32 = arith.constant 0 : i32
    %c0_i32_0 = arith.constant 0 : i32
    %c0_i32_1 = arith.constant 0 : i32
    return %c0_i32, %c0_i32_0 : i32, i32
  }
  func.func @transform_8(%arg0: i32) -> (i32, i32) {
    %c0_i32 = arith.constant 0 : i32
    %c0_i32_0 = arith.constant 0 : i32
    %c0_i32_1 = arith.constant 0 : i32
    return %c0_i32, %c0_i32_0 : i32, i32
  }
  func.func @transform_9(%arg0: i32) -> i32 {
    %c0_i32 = arith.constant 0 : i32
    %c0_i32_0 = arith.constant 0 : i32
    return %c0_i32 : i32
  }
  func.func @transform_10(%arg0: i32) -> i32 {
    %c0_i32 = arith.constant 0 : i32
    %c0_i32_0 = arith.constant 0 : i32
    return %c0_i32 : i32
  }
  func.func @transform_11(%arg0: i32) -> (i32, i32) {
    %c0_i32 = arith.constant 0 : i32
    %c0_i32_0 = arith.constant 0 : i32
    return %c0_i32, %arg0 : i32, i32
  }
}

</mosaic_0001>

<llo_original>
// kernel: tpu_custom_call.1
$region0: #{tpu_custom_call.1}
  #allocation0 [shape = 'u32[]', space=smem, size = 0x4, offset = 0x4, fixed_abs, tag = 'smem constant byte address 0x4 - core index']
  #allocation1 [shape = 'u32[144,128]{1,0:T(1,128)}', space=vmem, size = 0x12000, scoped, tag = 'internal scratch']
  #allocation2 [shape = 'f32[1]{0:T(128)S(6)}', space=smem, size = 0x200, scoped, tag = 'scoped memory for tpu_custom_call.1']
  #allocation3 [shape = 'f32[1]{0:T(128)S(6)}', space=smem, size = 0x200, scoped, tag = 'scoped memory for tpu_custom_call.1']
  %s0 = inlined_call_operand.vmem [shape: f32[4,512], index: 0, kind: input, shape index: {}]
  %s1 = inlined_call_operand.vmem [shape: f32[8,4], index: 1, kind: input, shape index: {}]
  %s2 = inlined_call_operand.vmem [shape: f32[8,1], index: 2, kind: input, shape index: {}]
  %s3 = inlined_call_operand.vmem [shape: f32[3,8], index: 3, kind: input, shape index: {}]
  %s4 = inlined_call_operand.vmem [shape: f32[9,8], index: 4, kind: input, shape index: {}]
  %s5 = inlined_call_operand.vmem [shape: f32[4,8], index: 5, kind: input, shape index: {}]
  %s6 = inlined_call_operand.vmem [shape: f32[4,1], index: 6, kind: input, shape index: {}]
  %s7 = inlined_call_operand.vmem [shape: f32[8,4], index: 7, kind: input, shape index: {}]
  %s8 = inlined_call_operand.vmem [shape: f32[8,1], index: 8, kind: input, shape index: {}]
  %s9 = inlined_call_operand.<no memory space> [shape: f32[1], index: 9, kind: input, shape index: {}]
  %s10 = inlined_call_operand.<no memory space> [shape: f32[1], index: 10, kind: input, shape index: {}]
  %s11 = inlined_call_operand.hbm [shape: f32[8,512], index: 11, kind: output, shape index: {}]
  %s12 = sld [smem:[#allocation0]]
  $region77: #{tpu_custom_call.1} parent=0
    _
  %s14 = ssub.s32 1, %s12
  %s15 = scalar_select 0, %s14, %s12
  %16 = sst [smem:[#allocation2]] %s9
  %17 = sst [smem:[#allocation3]] %s10
  $region1: #{tpu_custom_call.1} parent=0
    #allocation4 [shape = 'u8[16384]{0}', space=vmem, size = 0x4000, scoped, tag = 'output window, operand 0']
    #allocation5 [shape = 's32[2]{0}', space=sflag, size = 0x8, scoped, tag = 'scoped memory for tpu_custom_call.1']
    %18 = vsyncpa [#allocation5], 0
    %s19 = scalar_lea.sflag [#allocation5], 1
    %20 = vsyncpa %s19, 0
    loop: start=0, step=1, limit=4
    $region2: #{tpu_custom_call.1} parent=1 // loop_pre_header
      _
    $region3: #{tpu_custom_call.1} parent=1 // loop_header
      %s22 = sphi 0, %s26
      %p23 = scmp.ge.s32.totalorder %s22, 4
      %s32 = sphi 0, %s34
      %s35 = sphi 0, %s32
      %s36 = sphi 0, %s35
      %s52 = sphi 0, %s36
      %s56 = sphi 0, %s56
      %s58 = sphi 0, %s56
      %s59 = sphi 0, %s58
      %s73 = sphi 0, %s59
      %s77 = sphi 0, %s77
      %s79 = sphi 0, %s77
      %s80 = sphi 0, %s79
      %s94 = sphi 0, %s80
      %s98 = sphi 0, %s98
      %s100 = sphi 0, %s98
      %s101 = sphi 0, %s100
      %s115 = sphi 0, %s101
      %s119 = sphi 0, %s119
      %s121 = sphi 0, %s119
      %s122 = sphi 0, %s121
      %s136 = sphi 0, %s122
      %s140 = sphi 0, %s140
      %s142 = sphi 0, %s140
      %s143 = sphi 0, %s142
      %s157 = sphi 0, %s143
      %s161 = sphi 0, %s161
      %s163 = sphi 0, %s161
      %s164 = sphi 0, %s163
      %s178 = sphi 0, %s164
      %s182 = sphi 0, %s182
      %s184 = sphi 0, %s182
      %s185 = sphi 0, %s184
      %s199 = sphi 0, %s185
      %s203 = sphi 0, %s203
      %s205 = sphi 0, %s203
      %s206 = sphi 0, %s205
      %s220 = sphi 0, %s206
      %s224 = sphi 0, %s224
      %s226 = sphi 0, %s224
      %s227 = sphi 0, %s226
      %s241 = sphi 0, %s227
      %s245 = sphi 0, %s245
      %s247 = sphi 0, %s245
      %s248 = sphi 0, %s247
      %s262 = sphi 0, %s248
      %s268 = sphi 0, %s270
      %s271 = sphi 0, %s268
      %s272 = sphi 0, %s271
      %s288 = sphi 0, %s272
    $region4: #{tpu_custom_call.1} parent=1 // loop_header_branch
      %25 = sbr.rel (%p23) target = $region8
    $region5: #{tpu_custom_call.1} parent=1 // loop_body
      %s27 = ssub.s32 %s22, 1
      %s28 = ssub.s32 %s22, 2
      %s29 = sadd.s32 %s22, 1
      %s30 = ssub.s32 %s22, %s29
      %p31 = scmp.eq.s32.totalorder %s30, 0
      %s33 = sadd.s32 %s32, 1
      %s34 = scalar_select %p31, %s32, %s33
      %p37 = pneg %p31
      %p38 = scmp.eq.s32.totalorder %s22, 1
      %p39 = por %p37, %p38
      %p40 = scmp.ne.s32.totalorder %s32, %s35
      %p41 = scmp.eq.s32.totalorder %s22, 0
      %p42 = por %p40, %p41
      %p43 = scmp.ne.s32.totalorder %s32, %s35
      %p44 = scmp.eq.s32.totalorder %s27, 1
      %p45 = por %p43, %p44
      %p46 = scmp.ne.s32.totalorder %s35, %s36
      %p47 = scmp.eq.s32.totalorder %s27, 0
      %p48 = por %p46, %p47
      %p49 = scmp.ne.s32.totalorder %s35, %s36
      %p50 = scmp.eq.s32.totalorder %s28, 1
      %p51 = por %p49, %p50
      %p53 = scmp.ne.s32.totalorder %s36, %s52
      %p54 = scmp.eq.s32.totalorder %s28, 0
      %p55 = por %p53, %p54
      %s57 = sadd.s32 %s56, 1
      %p60 = scmp.eq.s32.totalorder %s22, 1
      %p61 = scmp.ne.s32.totalorder %s56, %s58
      %p62 = scmp.eq.s32.totalorder %s22, 0
      %p63 = por %p61, %p62
      %p64 = scmp.ne.s32.totalorder %s56, %s58
      %p65 = scmp.eq.s32.totalorder %s27, 1
      %p66 = por %p64, %p65
      %p67 = scmp.ne.s32.totalorder %s58, %s59
      %p68 = scmp.eq.s32.totalorder %s27, 0
      %p69 = por %p67, %p68
      %p70 = scmp.ne.s32.totalorder %s58, %s59
      %p71 = scmp.eq.s32.totalorder %s28, 1
      %p72 = por %p70, %p71
      %p74 = scmp.ne.s32.totalorder %s59, %s73
      %p75 = scmp.eq.s32.totalorder %s28, 0
      %p76 = por %p74, %p75
      %s78 = sadd.s32 %s77, 1
      %p81 = scmp.eq.s32.totalorder %s22, 1
      %p82 = scmp.ne.s32.totalorder %s77, %s79
      %p83 = scmp.eq.s32.totalorder %s22, 0
      %p84 = por %p82, %p83
      %p85 = scmp.ne.s32.totalorder %s77, %s79
      %p86 = scmp.eq.s32.totalorder %s27, 1
      %p87 = por %p85, %p86
      %p88 = scmp.ne.s32.totalorder %s79, %s80
      %p89 = scmp.eq.s32.totalorder %s27, 0
      %p90 = por %p88, %p89
      %p91 = scmp.ne.s32.totalorder %s79, %s80
      %p92 = scmp.eq.s32.totalorder %s28, 1
      %p93 = por %p91, %p92
      %p95 = scmp.ne.s32.totalorder %s80, %s94
      %p96 = scmp.eq.s32.totalorder %s28, 0
      %p97 = por %p95, %p96
      %s99 = sadd.s32 %s98, 1
      %p102 = scmp.eq.s32.totalorder %s22, 1
      %p103 = scmp.ne.s32.totalorder %s98, %s100
      %p104 = scmp.eq.s32.totalorder %s22, 0
      %p105 = por %p103, %p104
      %p106 = scmp.ne.s32.totalorder %s98, %s100
      %p107 = scmp.eq.s32.totalorder %s27, 1
      %p108 = por %p106, %p107
      %p109 = scmp.ne.s32.totalorder %s100, %s101
      %p110 = scmp.eq.s32.totalorder %s27, 0
      %p111 = por %p109, %p110
      %p112 = scmp.ne.s32.totalorder %s100, %s101
      %p113 = scmp.eq.s32.totalorder %s28, 1
      %p114 = por %p112, %p113
      %p116 = scmp.ne.s32.totalorder %s101, %s115
      %p117 = scmp.eq.s32.totalorder %s28, 0
      %p118 = por %p116, %p117
      %s120 = sadd.s32 %s119, 1
      %p123 = scmp.eq.s32.totalorder %s22, 1
      %p124 = scmp.ne.s32.totalorder %s119, %s121
      %p125 = scmp.eq.s32.totalorder %s22, 0
      %p126 = por %p124, %p125
      %p127 = scmp.ne.s32.totalorder %s119, %s121
      %p128 = scmp.eq.s32.totalorder %s27, 1
      %p129 = por %p127, %p128
      %p130 = scmp.ne.s32.totalorder %s121, %s122
      %p131 = scmp.eq.s32.totalorder %s27, 0
      %p132 = por %p130, %p131
      %p133 = scmp.ne.s32.totalorder %s121, %s122
      %p134 = scmp.eq.s32.totalorder %s28, 1
      %p135 = por %p133, %p134
      %p137 = scmp.ne.s32.totalorder %s122, %s136
      %p138 = scmp.eq.s32.totalorder %s28, 0
      %p139 = por %p137, %p138
      %s141 = sadd.s32 %s140, 1
      %p144 = scmp.eq.s32.totalorder %s22, 1
      %p145 = scmp.ne.s32.totalorder %s140, %s142
      %p146 = scmp.eq.s32.totalorder %s22, 0
      %p147 = por %p145, %p146
      %p148 = scmp.ne.s32.totalorder %s140, %s142
      %p149 = scmp.eq.s32.totalorder %s27, 1
      %p150 = por %p148, %p149
      %p151 = scmp.ne.s32.totalorder %s142, %s143
      %p152 = scmp.eq.s32.totalorder %s27, 0
      %p153 = por %p151, %p152
      %p154 = scmp.ne.s32.totalorder %s142, %s143
      %p155 = scmp.eq.s32.totalorder %s28, 1
      %p156 = por %p154, %p155
      %p158 = scmp.ne.s32.totalorder %s143, %s157
      %p159 = scmp.eq.s32.totalorder %s28, 0
      %p160 = por %p158, %p159
      %s162 = sadd.s32 %s161, 1
      %p165 = scmp.eq.s32.totalorder %s22, 1
      %p166 = scmp.ne.s32.totalorder %s161, %s163
      %p167 = scmp.eq.s32.totalorder %s22, 0
      %p168 = por %p166, %p167
      %p169 = scmp.ne.s32.totalorder %s161, %s163
      %p170 = scmp.eq.s32.totalorder %s27, 1
      %p171 = por %p169, %p170
      %p172 = scmp.ne.s32.totalorder %s163, %s164
      %p173 = scmp.eq.s32.totalorder %s27, 0
      %p174 = por %p172, %p173
      %p175 = scmp.ne.s32.totalorder %s163, %s164
      %p176 = scmp.eq.s32.totalorder %s28, 1
      %p177 = por %p175, %p176
      %p179 = scmp.ne.s32.totalorder %s164, %s178
      %p180 = scmp.eq.s32.totalorder %s28, 0
      %p181 = por %p179, %p180
      %s183 = sadd.s32 %s182, 1
      %p186 = scmp.eq.s32.totalorder %s22, 1
      %p187 = scmp.ne.s32.totalorder %s182, %s184
      %p188 = scmp.eq.s32.totalorder %s22, 0
      %p189 = por %p187, %p188
      %p190 = scmp.ne.s32.totalorder %s182, %s184
      %p191 = scmp.eq.s32.totalorder %s27, 1
      %p192 = por %p190, %p191
      %p193 = scmp.ne.s32.totalorder %s184, %s185
      %p194 = scmp.eq.s32.totalorder %s27, 0
      %p195 = por %p193, %p194
      %p196 = scmp.ne.s32.totalorder %s184, %s185
      %p197 = scmp.eq.s32.totalorder %s28, 1
      %p198 = por %p196, %p197
      %p200 = scmp.ne.s32.totalorder %s185, %s199
      %p201 = scmp.eq.s32.totalorder %s28, 0
      %p202 = por %p200, %p201
      %s204 = sadd.s32 %s203, 1
      %p207 = scmp.eq.s32.totalorder %s22, 1
      %p208 = scmp.ne.s32.totalorder %s203, %s205
      %p209 = scmp.eq.s32.totalorder %s22, 0
      %p210 = por %p208, %p209
      %p211 = scmp.ne.s32.totalorder %s203, %s205
      %p212 = scmp.eq.s32.totalorder %s27, 1
      %p213 = por %p211, %p212
      %p214 = scmp.ne.s32.totalorder %s205, %s206
      %p215 = scmp.eq.s32.totalorder %s27, 0
      %p216 = por %p214, %p215
      %p217 = scmp.ne.s32.totalorder %s205, %s206
      %p218 = scmp.eq.s32.totalorder %s28, 1
      %p219 = por %p217, %p218
      %p221 = scmp.ne.s32.totalorder %s206, %s220
      %p222 = scmp.eq.s32.totalorder %s28, 0
      %p223 = por %p221, %p222
      %s225 = sadd.s32 %s224, 1
      %p228 = scmp.eq.s32.totalorder %s22, 1
      %p229 = scmp.ne.s32.totalorder %s224, %s226
      %p230 = scmp.eq.s32.totalorder %s22, 0
      %p231 = por %p229, %p230
      %p232 = scmp.ne.s32.totalorder %s224, %s226
      %p233 = scmp.eq.s32.totalorder %s27, 1
      %p234 = por %p232, %p233
      %p235 = scmp.ne.s32.totalorder %s226, %s227
      %p236 = scmp.eq.s32.totalorder %s27, 0
      %p237 = por %p235, %p236
      %p238 = scmp.ne.s32.totalorder %s226, %s227
      %p239 = scmp.eq.s32.totalorder %s28, 1
      %p240 = por %p238, %p239
      %p242 = scmp.ne.s32.totalorder %s227, %s241
      %p243 = scmp.eq.s32.totalorder %s28, 0
      %p244 = por %p242, %p243
      %s246 = sadd.s32 %s245, 1
      %p249 = scmp.eq.s32.totalorder %s22, 1
      %p250 = scmp.ne.s32.totalorder %s245, %s247
      %p251 = scmp.eq.s32.totalorder %s22, 0
      %p252 = por %p250, %p251
      %p253 = scmp.ne.s32.totalorder %s245, %s247
      %p254 = scmp.eq.s32.totalorder %s27, 1
      %p255 = por %p253, %p254
      %p256 = scmp.ne.s32.totalorder %s247, %s248
      %p257 = scmp.eq.s32.totalorder %s27, 0
      %p258 = por %p256, %p257
      %p259 = scmp.ne.s32.totalorder %s247, %s248
      %p260 = scmp.eq.s32.totalorder %s28, 1
      %p261 = por %p259, %p260
      %p263 = scmp.ne.s32.totalorder %s248, %s262
      %p264 = scmp.eq.s32.totalorder %s28, 0
      %p265 = por %p263, %p264
      %s266 = ssub.s32 %s22, %s29
      %p267 = scmp.eq.s32.totalorder %s266, 0
      %s269 = sadd.s32 %s268, 1
      %s270 = scalar_select %p267, %s268, %s269
      %p273 = pneg %p267
      %p274 = scmp.eq.s32.totalorder %s22, 1
      %p275 = por %p273, %p274
      %p276 = scmp.ne.s32.totalorder %s268, %s271
      %p277 = scmp.eq.s32.totalorder %s22, 0
      %p278 = por %p276, %p277
      %p279 = scmp.ne.s32.totalorder %s268, %s271
      %p280 = scmp.eq.s32.totalorder %s27, 1
      %p281 = por %p279, %p280
      %p282 = scmp.ne.s32.totalorder %s271, %s272
      %p283 = scmp.eq.s32.totalorder %s27, 0
      %p284 = por %p282, %p283
      %p285 = scmp.ne.s32.totalorder %s271, %s272
      %p286 = scmp.eq.s32.totalorder %s28, 1
      %p287 = por %p285, %p286
      %p289 = scmp.ne.s32.totalorder %s272, %s288
      %p290 = scmp.eq.s32.totalorder %s28, 0
      %p291 = por %p289, %p290
      %p292 = scmp.le.s32.totalorder 1, %s22
      %p293 = scmp.lt.s32.totalorder %s22, 3
      %p294 = pnand %p292, %p293
      %p295 = pneg %p294
      // Predicated region
      $region9: #{tpu_custom_call.1} parent=5 // pred_check
        _
      $region10: #{tpu_custom_call.1} parent=5 // pred_check_branch
        %297 = sbr.rel (%p294) target = $region12
      $region11: #{tpu_custom_call.1} parent=5 // pred_region
        %s298 = ssub.s32 %s22, 1
        // Predicated region
        $region13: #{tpu_custom_call.1} parent=11 // pred_check
          %p299 = pneg %p69
        $region14: #{tpu_custom_call.1} parent=11 // pred_check_branch
          %301 = sbr.rel (%p299) target = $region16
        $region15: #{tpu_custom_call.1} parent=11 // pred_region
          _
        $region16: #{tpu_custom_call.1} parent=11 // pred_fallthru
          _
        // Predicated region
        $region17: #{tpu_custom_call.1} parent=11 // pred_check
          %p302 = pneg %p90
        $region18: #{tpu_custom_call.1} parent=11 // pred_check_branch
          %304 = sbr.rel (%p302) target = $region20
        $region19: #{tpu_custom_call.1} parent=11 // pred_region
          _
        $region20: #{tpu_custom_call.1} parent=11 // pred_fallthru
          _
        // Predicated region
        $region21: #{tpu_custom_call.1} parent=11 // pred_check
          %p305 = pneg %p111
        $region22: #{tpu_custom_call.1} parent=11 // pred_check_branch
          %307 = sbr.rel (%p305) target = $region24
        $region23: #{tpu_custom_call.1} parent=11 // pred_region
          _
        $region24: #{tpu_custom_call.1} parent=11 // pred_fallthru
          _
        // Predicated region
        $region25: #{tpu_custom_call.1} parent=11 // pred_check
          %p308 = pneg %p132
        $region26: #{tpu_custom_call.1} parent=11 // pred_check_branch
          %310 = sbr.rel (%p308) target = $region28
        $region27: #{tpu_custom_call.1} parent=11 // pred_region
          _
        $region28: #{tpu_custom_call.1} parent=11 // pred_fallthru
          _
        // Predicated region
        $region29: #{tpu_custom_call.1} parent=11 // pred_check
          %p311 = pneg %p153
        $region30: #{tpu_custom_call.1} parent=11 // pred_check_branch
          %313 = sbr.rel (%p311) target = $region32
        $region31: #{tpu_custom_call.1} parent=11 // pred_region
          _
        $region32: #{tpu_custom_call.1} parent=11 // pred_fallthru
          _
        // Predicated region
        $region33: #{tpu_custom_call.1} parent=11 // pred_check
          %p314 = pneg %p174
        $region34: #{tpu_custom_call.1} parent=11 // pred_check_branch
          %316 = sbr.rel (%p314) target = $region36
        $region35: #{tpu_custom_call.1} parent=11 // pred_region
          _
        $region36: #{tpu_custom_call.1} parent=11 // pred_fallthru
          _
        // Predicated region
        $region37: #{tpu_custom_call.1} parent=11 // pred_check
          %p317 = pneg %p195
        $region38: #{tpu_custom_call.1} parent=11 // pred_check_branch
          %319 = sbr.rel (%p317) target = $region40
        $region39: #{tpu_custom_call.1} parent=11 // pred_region
          _
        $region40: #{tpu_custom_call.1} parent=11 // pred_fallthru
          _
        // Predicated region
        $region41: #{tpu_custom_call.1} parent=11 // pred_check
          %p320 = pneg %p216
        $region42: #{tpu_custom_call.1} parent=11 // pred_check_branch
          %322 = sbr.rel (%p320) target = $region44
        $region43: #{tpu_custom_call.1} parent=11 // pred_region
          _
        $region44: #{tpu_custom_call.1} parent=11 // pred_fallthru
          _
        // Predicated region
        $region45: #{tpu_custom_call.1} parent=11 // pred_check
          %p323 = pneg %p237
        $region46: #{tpu_custom_call.1} parent=11 // pred_check_branch
          %325 = sbr.rel (%p323) target = $region48
        $region47: #{tpu_custom_call.1} parent=11 // pred_region
          _
        $region48: #{tpu_custom_call.1} parent=11 // pred_fallthru
          _
        // Predicated region
        $region49: #{tpu_custom_call.1} parent=11 // pred_check
          %p326 = pneg %p258
        $region50: #{tpu_custom_call.1} parent=11 // pred_check_branch
          %328 = sbr.rel (%p326) target = $region52
        $region51: #{tpu_custom_call.1} parent=11 // pred_region
          _
        $region52: #{tpu_custom_call.1} parent=11 // pred_fallthru
          _
      $region12: #{tpu_custom_call.1} parent=5 // pred_fallthru
        _
      %p329 = scmp.lt.s32.totalorder %s22, 2
      // Predicated region
      $region53: #{tpu_custom_call.1} parent=5 // pred_check
        %p330 = pneg %p329
      $region54: #{tpu_custom_call.1} parent=5 // pred_check_branch
        %332 = sbr.rel (%p330) target = $region56
      $region55: #{tpu_custom_call.1} parent=5 // pred_region
        // Predicated region
        $region57: #{tpu_custom_call.1} parent=55 // pred_check
          %p333 = pneg %p42
        $region58: #{tpu_custom_call.1} parent=55 // pred_check_branch
          %335 = sbr.rel (%p333) target = $region60
        $region59: #{tpu_custom_call.1} parent=55 // pred_region
          %s336 = smul.u32 2, %s22
          %p337 = scmp.lt.s32.totalorder %s336, 3
          %s338 = scalar_select %p337, %s336, 3
          %s339 = smul.addr %s338, 4
          %s340 = scalar_lea.vmem %s0, %s339
          %s341 = smul.u32 2, %s22
        $region60: #{tpu_custom_call.1} parent=55 // pred_fallthru
          _
      $region56: #{tpu_custom_call.1} parent=5 // pred_fallthru
        _
      %p342 = scmp.le.s32.totalorder 1, %s22
      %p343 = scmp.lt.s32.totalorder %s22, 3
      %p344 = pnand %p342, %p343
      %p345 = pneg %p344
      // Predicated region
      $region61: #{tpu_custom_call.1} parent=5 // pred_check
        _
      $region62: #{tpu_custom_call.1} parent=5 // pred_check_branch
        %347 = sbr.rel (%p344) target = $region64
      $region63: #{tpu_custom_call.1} parent=5 // pred_region
        %s348 = ssub.s32 %s22, 1
        %s349 = smul.u32 2, %s27
        %p350 = scmp.lt.s32.totalorder %s349, 3
        %s351 = scalar_select %p350, %s349, 3
        %s352 = smul.addr %s351, 4
        %s353 = scalar_lea.vmem %s0, %s352
        %p354 = pneg %p48
        %p355 = pneg %p45
        %p356 = pneg %p69
        %p357 = pneg %p66
        %p358 = pneg %p90
        %p359 = pneg %p87
        %p360 = pneg %p111
        %p361 = pneg %p108
        %p362 = pneg %p132
        %p363 = pneg %p129
        %p364 = pneg %p153
        %p365 = pneg %p150
        %p366 = pneg %p174
        %p367 = pneg %p171
        %p368 = pneg %p195
        %p369 = pneg %p192
        %p370 = pneg %p216
        %p371 = pneg %p213
        %p372 = pneg %p237
        %p373 = pneg %p234
        %p374 = pneg %p258
        %p375 = pneg %p255
        %p376 = pneg %p284
        %p377 = pneg %p281
        %s378 = sand.u32 %s271, 1
        %s379 = scalar_lea.sflag [#allocation5], %s378
        %s380 = sand.u32 %s271, 1
        %s381 = smul.addr %s380, 16
        %s382 = scalar_lea.vmem [#allocation4], %s381
        %s383 = smul.u32 2, %s27
        %p384 = scmp.lt.s32.totalorder %s383, 3
        %s385 = scalar_select %p384, %s383, 3
        %s386 = smul.addr %s385, 4
        %s387 = scalar_lea.vmem %s0, %s386
        %s388 = smul.u32 2, %s27
        %s389 = smul.u32 2, %s27
        %v390 = vld [vmem:[%s1] sm:$0xff]
        %v391 = vld [vmem:[%s2] sm:$0xff]
        %v392 = vld [vmem:[%s3] sm:$0x7]
        %v393 = vld [vmem:[%s4] sm:$0xff]
        %v394 = vld [vmem:[%s4 + $0x8] sm:$0x1]
        %v395 = vld [vmem:[%s5] sm:$0xf]
        %v396 = vld [vmem:[%s6] sm:$0xf]
        %v397 = vld [vmem:[%s7] sm:$0xff]
        %v398 = vld [vmem:[%s8] sm:$0xff]
        %s399 = sld [smem:[#allocation2]]
        %s400 = sld [smem:[#allocation3]]
        %v401 = vlaneseq
        %v402 = vand.u32 %v401, 127
        %v403 = vadd.s32 %v402, 128
        %v404 = vand.u32 %v402, 255
        %v405 = vand.u32 %v403, 255
        %v406 = vshra.s32 %v404, 4
        %v407 = vshra.s32 %v405, 4
        %v408 = vand.u32 %v404, 15
        %v409 = vand.u32 %v405, 15
        %v410 = vand.u32 %v402, 1
        %v411 = vand.u32 %v403, 1
        %vm412 = vcmp.ne.s32.totalorder %v410, 0
        %vm413 = vcmp.ne.s32.totalorder %v411, 0
        %v414 = vand.u32 %v402, 2
        %v415 = vand.u32 %v403, 2
        %vm416 = vcmp.ne.s32.totalorder %v414, 0
        %vm417 = vcmp.ne.s32.totalorder %v415, 0
        %v418 = vand.u32 %v402, 4
        %v419 = vand.u32 %v403, 4
        %vm420 = vcmp.ne.s32.totalorder %v418, 0
        %vm421 = vcmp.ne.s32.totalorder %v419, 0
        %v422 = vand.u32 %v402, 8
        %v423 = vand.u32 %v403, 8
        %vm424 = vcmp.ne.s32.totalorder %v422, 0
        %vm425 = vcmp.ne.s32.totalorder %v423, 0
        %v426 = vand.u32 %v402, 16
        %v427 = vand.u32 %v403, 16
        %vm428 = vcmp.ne.s32.totalorder %v426, 0
        %vm429 = vcmp.ne.s32.totalorder %v427, 0
        %v430 = vand.u32 %v402, 32
        %v431 = vand.u32 %v403, 32
        %vm432 = vcmp.ne.s32.totalorder %v430, 0
        %vm433 = vcmp.ne.s32.totalorder %v431, 0
        %v434 = vand.u32 %v402, 64
        %v435 = vand.u32 %v403, 64
        %vm436 = vcmp.ne.s32.totalorder %v434, 0
        %vm437 = vcmp.ne.s32.totalorder %v435, 0
        %v438 = vand.u32 %v402, 128
        %v439 = vand.u32 %v403, 128
        %vm440 = vcmp.ne.s32.totalorder %v438, 0
        %vm441 = vcmp.ne.s32.totalorder %v439, 0
        %v442 = vadd.s32 %v406, 4294967295
        %v443 = vadd.s32 %v407, 4294967295
        %vm444 = vcmp.ge.s32.totalorder %v442, 0
        %vm445 = vcmp.ge.s32.totalorder %v443, 0
        %vm446 = vcmp.lt.s32.totalorder %v442, 16
        %vm447 = vcmp.lt.s32.totalorder %v443, 16
        %vm448 = vmand %vm444, %vm446
        %vm449 = vmand %vm445, %vm447
        %vm450 = vcmp.ge.s32.totalorder %v406, 0
        %vm451 = vcmp.ge.s32.totalorder %v407, 0
        %vm452 = vcmp.lt.s32.totalorder %v406, 16
        %vm453 = vcmp.lt.s32.totalorder %v407, 16
        %vm454 = vmand %vm450, %vm452
        %vm455 = vmand %vm451, %vm453
        %v456 = vadd.s32 %v406, 1
        %v457 = vadd.s32 %v407, 1
        %vm458 = vcmp.ge.s32.totalorder %v456, 0
        %vm459 = vcmp.ge.s32.totalorder %v457, 0
        %vm460 = vcmp.lt.s32.totalorder %v456, 16
        %vm461 = vcmp.lt.s32.totalorder %v457, 16
        %vm462 = vmand %vm458, %vm460
        %vm463 = vmand %vm459, %vm461
        %v464 = vadd.s32 %v408, 4294967292
        %v465 = vadd.s32 %v409, 4294967292
        %vm466 = vcmp.ge.s32.totalorder %v464, 0
        %vm467 = vcmp.ge.s32.totalorder %v465, 0
        %vm468 = vcmp.lt.s32.totalorder %v464, 16
        %vm469 = vcmp.lt.s32.totalorder %v465, 16
        %vm470 = vmand %vm466, %vm468
        %vm471 = vmand %vm467, %vm469
        %v472 = vadd.s32 %v408, 4294967293
        %v473 = vadd.s32 %v409, 4294967293
        %vm474 = vcmp.ge.s32.totalorder %v472, 0
        %vm475 = vcmp.ge.s32.totalorder %v473, 0
        %vm476 = vcmp.lt.s32.totalorder %v472, 16
        %vm477 = vcmp.lt.s32.totalorder %v473, 16
        %vm478 = vmand %vm474, %vm476
        %vm479 = vmand %vm475, %vm477
        %v480 = vadd.s32 %v408, 4294967294
        %v481 = vadd.s32 %v409, 4294967294
        %vm482 = vcmp.ge.s32.totalorder %v480, 0
        %vm483 = vcmp.ge.s32.totalorder %v481, 0
        %vm484 = vcmp.lt.s32.totalorder %v480, 16
        %vm485 = vcmp.lt.s32.totalorder %v481, 16
        %vm486 = vmand %vm482, %vm484
        %vm487 = vmand %vm483, %vm485
        %v488 = vadd.s32 %v408, 4294967295
        %v489 = vadd.s32 %v409, 4294967295
        %vm490 = vcmp.ge.s32.totalorder %v488, 0
        %vm491 = vcmp.ge.s32.totalorder %v489, 0
        %vm492 = vcmp.lt.s32.totalorder %v488, 16
        %vm493 = vcmp.lt.s32.totalorder %v489, 16
        %vm494 = vmand %vm490, %vm492
        %vm495 = vmand %vm491, %vm493
        %vm496 = vcmp.ge.s32.totalorder %v408, 0
        %vm497 = vcmp.ge.s32.totalorder %v409, 0
        %vm498 = vcmp.lt.s32.totalorder %v408, 16
        %vm499 = vcmp.lt.s32.totalorder %v409, 16
        %vm500 = vmand %vm496, %vm498
        %vm501 = vmand %vm497, %vm499
        %v502 = vadd.s32 %v408, 1
        %v503 = vadd.s32 %v409, 1
        %vm504 = vcmp.ge.s32.totalorder %v502, 0
        %vm505 = vcmp.ge.s32.totalorder %v503, 0
        %vm506 = vcmp.lt.s32.totalorder %v502, 16
        %vm507 = vcmp.lt.s32.totalorder %v503, 16
        %vm508 = vmand %vm504, %vm506
        %vm509 = vmand %vm505, %vm507
        %v510 = vadd.s32 %v408, 2
        %v511 = vadd.s32 %v409, 2
        %vm512 = vcmp.ge.s32.totalorder %v510, 0
        %vm513 = vcmp.ge.s32.totalorder %v511, 0
        %vm514 = vcmp.lt.s32.totalorder %v510, 16
        %vm515 = vcmp.lt.s32.totalorder %v511, 16
        %vm516 = vmand %vm512, %vm514
        %vm517 = vmand %vm513, %vm515
        %v518 = vadd.s32 %v408, 3
        %v519 = vadd.s32 %v409, 3
        %vm520 = vcmp.ge.s32.totalorder %v518, 0
        %vm521 = vcmp.ge.s32.totalorder %v519, 0
        %vm522 = vcmp.lt.s32.totalorder %v518, 16
        %vm523 = vcmp.lt.s32.totalorder %v519, 16
        %vm524 = vmand %vm520, %vm522
        %vm525 = vmand %vm521, %vm523
        %v526 = vadd.s32 %v408, 4
        %v527 = vadd.s32 %v409, 4
        %vm528 = vcmp.ge.s32.totalorder %v526, 0
        %vm529 = vcmp.ge.s32.totalorder %v527, 0
        %vm530 = vcmp.lt.s32.totalorder %v526, 16
        %vm531 = vcmp.lt.s32.totalorder %v527, 16
        %vm532 = vmand %vm528, %vm530
        %vm533 = vmand %vm529, %vm531
        %v534 = vld [vmem:[%s387] sm:$0xff]
        %536 = vset.pattern.permute.xlu0 0
        %537 = vperm.xlu0 %536, %v391
        %v538 = vpop.permute.xlu0 %537
        %v541 = vcombine.high %v534, %v534
        %vm542 = vcmask 31744
        %v544 = vsel %vm542, %v390, 0
        %vm546 = vcmask 1043456
        %v547 = vsel %vm546, %v534, 0
        %v549 = vsel %vm546, %v541, 0
        %551 = vmatprep.subr.mxu0 %v549
        %552 = vmatpush1.msra.mxu0 %v547
        %553 = vmatprep.subr.mxu0 0.0
        %554 = vmatpush1.msra.mxu0 0.0
        %555 = vmatprep.subr.mxu0 0.0
        %556 = vmatpush1.msra.mxu0 0.0
        %557 = vmatprep.subr.mxu0 0.0
        %558 = vmatpush1.msra.mxu0 0.0
        %559 = vmatprep.subr.mxu0 0.0
        %560 = vmatpush1.msra.mxu0 0.0
        %561 = vmatprep.subr.mxu0 0.0
        %562 = vmatpush1.msra.mxu0 0.0
        %563 = vmatprep.subr.mxu0 0.0
        %564 = vmatpush1.msra.mxu0 0.0
        %565 = vmatprep.subr.mxu0 0.0
        %566 = vmatpush1.msra.mxu0 0.0
        %567 = vmatprep.subr.mxu0 0.0
        %568 = vmatpush1.msra.mxu0 0.0
        %569 = vmatprep.subr.mxu0 0.0
        %570 = vmatpush1.msra.mxu0 0.0
        %571 = vmatprep.subr.mxu0 0.0
        %572 = vmatpush1.msra.mxu0 0.0
        %573 = vmatprep.subr.mxu0 0.0
        %574 = vmatpush1.msra.mxu0 0.0
        %575 = vmatprep.subr.mxu0 0.0
        %576 = vmatpush1.msra.mxu0 0.0
        %577 = vmatprep.subr.mxu0 0.0
        %578 = vmatpush1.msra.mxu0 0.0
        %579 = vmatprep.subr.mxu0 0.0
        %580 = vmatpush1.msra.mxu0 0.0
        %581 = vmatprep.subr.mxu0 0.0
        %582 = vmatpush1.msra.mxu0 0.0
        %583 = vmatprep.subr.mxu0 0.0
        %584 = vmatpush1.msra.mxu0 0.0
        %585 = vmatprep.subr.mxu0 0.0
        %586 = vmatpush1.msra.mxu0 0.0
        %587 = vmatprep.subr.mxu0 0.0
        %588 = vmatpush1.msra.mxu0 0.0
        %589 = vmatprep.subr.mxu0 0.0
        %590 = vmatpush1.msra.mxu0 0.0
        %591 = vmatprep.subr.mxu0 0.0
        %592 = vmatpush1.msra.mxu0 0.0
        %593 = vmatprep.subr.mxu0 0.0
        %594 = vmatpush1.msra.mxu0 0.0
        %595 = vmatprep.subr.mxu0 0.0
        %596 = vmatpush1.msra.mxu0 0.0
        %597 = vmatprep.subr.mxu0 0.0
        %598 = vmatpush1.msra.mxu0 0.0
        %599 = vmatprep.subr.mxu0 0.0
        %600 = vmatpush1.msra.mxu0 0.0
        %601 = vmatprep.subr.mxu0 0.0
        %602 = vmatpush1.msra.mxu0 0.0
        %603 = vmatprep.subr.mxu0 0.0
        %604 = vmatpush1.msra.mxu0 0.0
        %605 = vmatprep.subr.mxu0 0.0
        %606 = vmatpush1.msra.mxu0 0.0
        %607 = vmatprep.subr.mxu0 0.0
        %608 = vmatpush1.msra.mxu0 0.0
        %609 = vmatprep.subr.mxu0 0.0
        %610 = vmatpush1.msra.mxu0 0.0
        %611 = vmatprep.subr.mxu0 0.0
        %612 = vmatpush1.msra.mxu0 0.0
        %613 = vmatprep.subr.mxu0 0.0
        %614 = vmatpush1.msra.mxu0 0.0
        %615 = vmatprep.mubr.f32.mxu0 0.0
        %616 = vmatmul.mubr.f32.gmra.mrb[0].mxu0 %v544
        %v617 = vpop.f32.mrb[0].mxu0
        %v618 = vadd.f32 %v538, %v617
        %v619 = vpop.f32.mrb[0].mxu0
        %v620 = vadd.f32 %v538, %v619
        %621 = vdwg.mxu0
        %622 = vrot.lane.b32.xlu0 %v618, 127
        %v623 = vpop.permute.xlu0 %622
        %624 = vrot.lane.b32.xlu0 %v620, 127
        %v625 = vpop.permute.xlu0 %624
        %vm626 = vcmp.lt.s32.totalorder %v402, 127
        %v627 = vsel %vm626, %v623, %v625
        %v628 = vsel %vm626, %v625, %v623
        %v629 = vadd.f32 %v618, %v627
        %v630 = vadd.f32 %v620, %v628
        %631 = vrot.lane.b32.xlu0 %v629, 126
        %v632 = vpop.permute.xlu0 %631
        %633 = vrot.lane.b32.xlu0 %v630, 126
        %v634 = vpop.permute.xlu0 %633
        %vm635 = vcmp.lt.s32.totalorder %v402, 126
        %v636 = vsel %vm635, %v632, %v634
        %v637 = vsel %vm635, %v634, %v632
        %v638 = vadd.f32 %v629, %v636
        %v639 = vadd.f32 %v630, %v637
        %640 = vrot.lane.b32.xlu0 %v638, 124
        %v641 = vpop.permute.xlu0 %640
        %642 = vrot.lane.b32.xlu0 %v639, 124
        %v643 = vpop.permute.xlu0 %642
        %vm644 = vcmp.lt.s32.totalorder %v402, 124
        %v645 = vsel %vm644, %v641, %v643
        %v646 = vsel %vm644, %v643, %v641
        %v647 = vadd.f32 %v638, %v645
        %v648 = vadd.f32 %v639, %v646
        %649 = vrot.lane.b32.xlu0 %v647, 120
        %v650 = vpop.permute.xlu0 %649
        %651 = vrot.lane.b32.xlu0 %v648, 120
        %v652 = vpop.permute.xlu0 %651
        %vm653 = vcmp.lt.s32.totalorder %v402, 120
        %v654 = vsel %vm653, %v650, %v652
        %v655 = vsel %vm653, %v652, %v650
        %v656 = vadd.f32 %v647, %v654
        %v657 = vadd.f32 %v648, %v655
        %v658 = vmul.f32 %v656, 0.0625
        %v659 = vmul.f32 %v657, 0.0625
        %vm660 = vcmask 64512
        %v662 = vsel %vm660, %v392, 0
        %664 = vmatprep.subr.mxu0 %v659
        %665 = vmatpush1.msra.mxu0 %v658
        %666 = vmatprep.subr.mxu0 0.0
        %667 = vmatpush1.msra.mxu0 0.0
        %668 = vmatprep.subr.mxu0 0.0
        %669 = vmatpush1.msra.mxu0 0.0
        %670 = vmatprep.subr.mxu0 0.0
        %671 = vmatpush1.msra.mxu0 0.0
        %672 = vmatprep.subr.mxu0 0.0
        %673 = vmatpush1.msra.mxu0 0.0
        %674 = vmatprep.subr.mxu0 0.0
        %675 = vmatpush1.msra.mxu0 0.0
        %676 = vmatprep.subr.mxu0 0.0
        %677 = vmatpush1.msra.mxu0 0.0
        %678 = vmatprep.subr.mxu0 0.0
        %679 = vmatpush1.msra.mxu0 0.0
        %680 = vmatprep.subr.mxu0 0.0
        %681 = vmatpush1.msra.mxu0 0.0
        %682 = vmatprep.subr.mxu0 0.0
        %683 = vmatpush1.msra.mxu0 0.0
        %684 = vmatprep.subr.mxu0 0.0
        %685 = vmatpush1.msra.mxu0 0.0
        %686 = vmatprep.subr.mxu0 0.0
        %687 = vmatpush1.msra.mxu0 0.0
        %688 = vmatprep.subr.mxu0 0.0
        %689 = vmatpush1.msra.mxu0 0.0
        %690 = vmatprep.subr.mxu0 0.0
        %691 = vmatpush1.msra.mxu0 0.0
        %692 = vmatprep.subr.mxu0 0.0
        %693 = vmatpush1.msra.mxu0 0.0
        %694 = vmatprep.subr.mxu0 0.0
        %695 = vmatpush1.msra.mxu0 0.0
        %696 = vmatprep.subr.mxu0 0.0
        %697 = vmatpush1.msra.mxu0 0.0
        %698 = vmatprep.subr.mxu0 0.0
        %699 = vmatpush1.msra.mxu0 0.0
        %700 = vmatprep.subr.mxu0 0.0
        %701 = vmatpush1.msra.mxu0 0.0
        %702 = vmatprep.subr.mxu0 0.0
        %703 = vmatpush1.msra.mxu0 0.0
        %704 = vmatprep.subr.mxu0 0.0
        %705 = vmatpush1.msra.mxu0 0.0
        %706 = vmatprep.subr.mxu0 0.0
        %707 = vmatpush1.msra.mxu0 0.0
        %708 = vmatprep.subr.mxu0 0.0
        %709 = vmatpush1.msra.mxu0 0.0
        %710 = vmatprep.subr.mxu0 0.0
        %711 = vmatpush1.msra.mxu0 0.0
        %712 = vmatprep.subr.mxu0 0.0
        %713 = vmatpush1.msra.mxu0 0.0
        %714 = vmatprep.subr.mxu0 0.0
        %715 = vmatpush1.msra.mxu0 0.0
        %716 = vmatprep.subr.mxu0 0.0
        %717 = vmatpush1.msra.mxu0 0.0
        %718 = vmatprep.subr.mxu0 0.0
        %719 = vmatpush1.msra.mxu0 0.0
        %720 = vmatprep.subr.mxu0 0.0
        %721 = vmatpush1.msra.mxu0 0.0
        %722 = vmatprep.subr.mxu0 0.0
        %723 = vmatpush1.msra.mxu0 0.0
        %724 = vmatprep.subr.mxu0 0.0
        %725 = vmatpush1.msra.mxu0 0.0
        %726 = vmatprep.subr.mxu0 0.0
        %727 = vmatpush1.msra.mxu0 0.0
        %728 = vmatprep.mubr.f32.mxu0 0.0
        %729 = vmatmul.mubr.f32.gmra.mrb[0].mxu0 %v662
        %v730 = vpop.f32.mrb[0].mxu0
        %v731 = vadd.f32 0.0, %v730
        %v732 = vpop.f32.mrb[0].mxu0
        %v733 = vadd.f32 0.0, %v732
        %734 = vdwg.mxu0
        %735 = vrot.lane.b32.xlu0 %v731, 16
        %v736 = vpop.permute.xlu0 %735
        %737 = vrot.lane.b32.xlu0 %v733, 16
        %v738 = vpop.permute.xlu0 %737
        %vm739 = vcmp.lt.s32.totalorder %v402, 16
        %v740 = vsel %vm739, %v736, %v738
        %v741 = vsel %vm739, %v738, %v736
        %v742 = vsel %vm448, %v741, 0.0
        %v743 = vsel %vm449, %v740, 0.0
        %v744 = vadd.f32 %v742, 0.0
        %v745 = vadd.f32 %v743, 0.0
        %v746 = vsel %vm454, %v731, 0.0
        %v747 = vsel %vm455, %v733, 0.0
        %v750 = vrot.slane %v746, 1
        %v751 = vrot.slane %v747, 1
        %v754 = vadd.f32 %v744, %v750
        %v755 = vadd.f32 %v745, %v751
        %v758 = vrot.slane %v731, 2
        %v759 = vrot.slane %v733, 2
        %762 = vrot.lane.b32.xlu0 %v758, 112
        %v763 = vpop.permute.xlu0 %762
        %764 = vrot.lane.b32.xlu0 %v759, 112
        %v765 = vpop.permute.xlu0 %764
        %vm766 = vcmp.lt.s32.totalorder %v402, 112
        %v767 = vsel %vm766, %v763, %v765
        %v768 = vsel %vm766, %v765, %v763
        %v769 = vsel %vm462, %v767, 0.0
        %v770 = vsel %vm463, %v768, 0.0
        %v771 = vadd.f32 %v754, %v769
        %v772 = vadd.f32 %v755, %v770
        %v773 = vstv %s399
        %v774 = vadd.f32 %v771, %v773
        %v775 = vadd.f32 %v772, %v773
        %v776 = vxor.u32 %v774, 2147483648
        %v777 = vxor.u32 %v775, 2147483648
        %v778 = vmul.f32 %v776, 1.442695
        %v779 = vpow.pop %v778
        %v780 = vmul.f32 %v777, 1.442695
        %v781 = vpow.pop %v780
        %v782 = vadd.f32 %v779, 1.0
        %v783 = vadd.f32 %v781, 1.0
        %v784 = vrcp.pop %v782
        %v785 = vmul.f32 1.0, %v784
        %v786 = vrcp.pop %v783
        %v787 = vmul.f32 1.0, %v786
        %788 = vrot.lane.b32.xlu0 %v785, 1
        %v789 = vpop.permute.xlu0 %788
        %790 = vrot.lane.b32.xlu0 %v787, 1
        %v791 = vpop.permute.xlu0 %790
        %vm792 = vcmp.lt.s32.totalorder %v402, 1
        %v793 = vsel %vm792, %v789, %v791
        %v794 = vsel %vm792, %v791, %v789
        %v795 = vsel %vm412, %v794, %v785
        %v796 = vsel %vm413, %v793, %v787
        %797 = vrot.lane.b32.xlu0 %v795, 2
        %v798 = vpop.permute.xlu0 %797
        %799 = vrot.lane.b32.xlu0 %v796, 2
        %v800 = vpop.permute.xlu0 %799
        %vm801 = vcmp.lt.s32.totalorder %v402, 2
        %v802 = vsel %vm801, %v798, %v800
        %v803 = vsel %vm801, %v800, %v798
        %v804 = vsel %vm416, %v803, %v795
        %v805 = vsel %vm417, %v802, %v796
        %806 = vrot.lane.b32.xlu0 %v804, 4
        %v807 = vpop.permute.xlu0 %806
        %808 = vrot.lane.b32.xlu0 %v805, 4
        %v809 = vpop.permute.xlu0 %808
        %vm810 = vcmp.lt.s32.totalorder %v402, 4
        %v811 = vsel %vm810, %v807, %v809
        %v812 = vsel %vm810, %v809, %v807
        %v813 = vsel %vm420, %v812, %v804
        %v814 = vsel %vm421, %v811, %v805
        %815 = vrot.lane.b32.xlu0 %v813, 8
        %v816 = vpop.permute.xlu0 %815
        %817 = vrot.lane.b32.xlu0 %v814, 8
        %v818 = vpop.permute.xlu0 %817
        %vm819 = vcmp.lt.s32.totalorder %v402, 8
        %v820 = vsel %vm819, %v816, %v818
        %v821 = vsel %vm819, %v818, %v816
        %v822 = vsel %vm424, %v821, %v813
        %v823 = vsel %vm425, %v820, %v814
        %v824 = vadd.f32 %v822, 1.0
        %v825 = vadd.f32 %v823, 1.0
        %v826 = vlaneseq
        %v827 = vshrl.u32 %v826, 7
        %v828 = vsub.s32 0, %v827
        %v829 = vrot.slane %v824, %v828
        %v830 = vlaneseq
        %v831 = vshrl.u32 %v830, 7
        %v832 = vsub.s32 0, %v831
        %v833 = vrot.slane %v825, %v832
        %v834 = vmul.f32 %v618, %v829
        %v835 = vmul.f32 %v620, %v833
        %836 = vrot.lane.b32.xlu0 %v834, 112
        %v837 = vpop.permute.xlu0 %836
        %838 = vrot.lane.b32.xlu0 %v835, 112
        %v839 = vpop.permute.xlu0 %838
        %v840 = vsel %vm766, %v837, %v839
        %v841 = vsel %vm766, %v839, %v837
        %v842 = vadd.f32 %v834, %v840
        %v843 = vadd.f32 %v835, %v841
        %844 = vrot.lane.b32.xlu0 %v842, 96
        %v845 = vpop.permute.xlu0 %844
        %846 = vrot.lane.b32.xlu0 %v843, 96
        %v847 = vpop.permute.xlu0 %846
        %vm848 = vcmp.lt.s32.totalorder %v402, 96
        %v849 = vsel %vm848, %v845, %v847
        %v850 = vsel %vm848, %v847, %v845
        %v851 = vadd.f32 %v842, %v849
        %v852 = vadd.f32 %v843, %v850
        %853 = vrot.lane.b32.xlu0 %v851, 64
        %v854 = vpop.permute.xlu0 %853
        %855 = vrot.lane.b32.xlu0 %v852, 64
        %v856 = vpop.permute.xlu0 %855
        %vm857 = vcmp.lt.s32.totalorder %v402, 64
        %v858 = vsel %vm857, %v854, %v856
        %v859 = vsel %vm857, %v856, %v854
        %v860 = vadd.f32 %v851, %v858
        %v861 = vadd.f32 %v852, %v859
        %v862 = vadd.f32 %v860, %v861
        %v863 = vmul.f32 %v862, 0.0625
        %v865 = vsel %vm660, %v393, 0
        %v868 = vsel %vm660, %v394, 0
        %870 = vmatprep.subr.mxu0 %v863
        %871 = vmatpush1.msra.mxu0 %v863
        %872 = vmatprep.subr.mxu0 0.0
        %873 = vmatpush1.msra.mxu0 0.0
        %874 = vmatprep.subr.mxu0 0.0
        %875 = vmatpush1.msra.mxu0 0.0
        %876 = vmatprep.subr.mxu0 0.0
        %877 = vmatpush1.msra.mxu0 0.0
        %878 = vmatprep.subr.mxu0 0.0
        %879 = vmatpush1.msra.mxu0 0.0
        %880 = vmatprep.subr.mxu0 0.0
        %881 = vmatpush1.msra.mxu0 0.0
        %882 = vmatprep.subr.mxu0 0.0
        %883 = vmatpush1.msra.mxu0 0.0
        %884 = vmatprep.subr.mxu0 0.0
        %885 = vmatpush1.msra.mxu0 0.0
        %886 = vmatprep.subr.mxu0 0.0
        %887 = vmatpush1.msra.mxu0 0.0
        %888 = vmatprep.subr.mxu0 0.0
        %889 = vmatpush1.msra.mxu0 0.0
        %890 = vmatprep.subr.mxu0 0.0
        %891 = vmatpush1.msra.mxu0 0.0
        %892 = vmatprep.subr.mxu0 0.0
        %893 = vmatpush1.msra.mxu0 0.0
        %894 = vmatprep.subr.mxu0 0.0
        %895 = vmatpush1.msra.mxu0 0.0
        %896 = vmatprep.subr.mxu0 0.0
        %897 = vmatpush1.msra.mxu0 0.0
        %898 = vmatprep.subr.mxu0 0.0
        %899 = vmatpush1.msra.mxu0 0.0
        %900 = vmatprep.subr.mxu0 0.0
        %901 = vmatpush1.msra.mxu0 0.0
        %902 = vmatprep.subr.mxu0 0.0
        %903 = vmatpush1.msra.mxu0 0.0
        %904 = vmatprep.subr.mxu0 0.0
        %905 = vmatpush1.msra.mxu0 0.0
        %906 = vmatprep.subr.mxu0 0.0
        %907 = vmatpush1.msra.mxu0 0.0
        %908 = vmatprep.subr.mxu0 0.0
        %909 = vmatpush1.msra.mxu0 0.0
        %910 = vmatprep.subr.mxu0 0.0
        %911 = vmatpush1.msra.mxu0 0.0
        %912 = vmatprep.subr.mxu0 0.0
        %913 = vmatpush1.msra.mxu0 0.0
        %914 = vmatprep.subr.mxu0 0.0
        %915 = vmatpush1.msra.mxu0 0.0
        %916 = vmatprep.subr.mxu0 0.0
        %917 = vmatpush1.msra.mxu0 0.0
        %918 = vmatprep.subr.mxu0 0.0
        %919 = vmatpush1.msra.mxu0 0.0
        %920 = vmatprep.subr.mxu0 0.0
        %921 = vmatpush1.msra.mxu0 0.0
        %922 = vmatprep.subr.mxu0 0.0
        %923 = vmatpush1.msra.mxu0 0.0
        %924 = vmatprep.subr.mxu0 0.0
        %925 = vmatpush1.msra.mxu0 0.0
        %926 = vmatprep.subr.mxu0 0.0
        %927 = vmatpush1.msra.mxu0 0.0
        %928 = vmatprep.subr.mxu0 0.0
        %929 = vmatpush1.msra.mxu0 0.0
        %930 = vmatprep.subr.mxu0 0.0
        %931 = vmatpush1.msra.mxu0 0.0
        %932 = vmatprep.subr.mxu0 0.0
        %933 = vmatpush1.msra.mxu0 0.0
        %934 = vmatprep.mubr.f32.mxu0 0.0
        %935 = vmatmul.mubr.f32.gmra.mrb[0].mxu0 %v865
        %v936 = vpop.f32.mrb[0].mxu0
        %v937 = vadd.f32 0.0, %v936
        %v938 = vpop.f32.mrb[0].mxu0
        %v939 = vadd.f32 0.0, %v938
        %940 = vmatprep.mubr.f32.mxu0 0.0
        %941 = vmatmul.mubr.f32.gmra.mrb[0].mxu0 %v868
        %v942 = vpop.f32.mrb[0].mxu0
        %v943 = vadd.f32 0.0, %v942
        %v944 = vpop.f32.mrb[0].mxu0
        %v945 = vadd.f32 0.0, %v944
        %946 = vdwg.mxu0
        %947 = vrot.lane.b32.xlu0 %v937, 4
        %v948 = vpop.permute.xlu0 %947
        %949 = vrot.lane.b32.xlu0 %v939, 4
        %v950 = vpop.permute.xlu0 %949
        %v951 = vsel %vm810, %v948, %v950
        %v952 = vsel %vm810, %v950, %v948
        %v953 = vsel %vm470, %v952, 0.0
        %v954 = vsel %vm471, %v951, 0.0
        %v955 = vadd.f32 %v953, 0.0
        %v956 = vadd.f32 %v954, 0.0
        %v959 = vrot.slane %v937, 1
        %v960 = vrot.slane %v939, 1
        %963 = vrot.lane.b32.xlu0 %v959, 3
        %v964 = vpop.permute.xlu0 %963
        %965 = vrot.lane.b32.xlu0 %v960, 3
        %v966 = vpop.permute.xlu0 %965
        %vm967 = vcmp.lt.s32.totalorder %v402, 3
        %v968 = vsel %vm967, %v964, %v966
        %v969 = vsel %vm967, %v966, %v964
        %v970 = vsel %vm478, %v969, 0.0
        %v971 = vsel %vm479, %v968, 0.0
        %v972 = vadd.f32 %v955, %v970
        %v973 = vadd.f32 %v956, %v971
        %v974 = vrot.slane %v937, 2
        %v975 = vrot.slane %v939, 2
        %978 = vrot.lane.b32.xlu0 %v974, 2
        %v979 = vpop.permute.xlu0 %978
        %980 = vrot.lane.b32.xlu0 %v975, 2
        %v981 = vpop.permute.xlu0 %980
        %v982 = vsel %vm801, %v979, %v981
        %v983 = vsel %vm801, %v981, %v979
        %v984 = vsel %vm486, %v983, 0.0
        %v985 = vsel %vm487, %v982, 0.0
        %v986 = vadd.f32 %v972, %v984
        %v987 = vadd.f32 %v973, %v985
        %v988 = vrot.slane %v937, 3
        %v989 = vrot.slane %v939, 3
        %992 = vrot.lane.b32.xlu0 %v988, 1
        %v993 = vpop.permute.xlu0 %992
        %994 = vrot.lane.b32.xlu0 %v989, 1
        %v995 = vpop.permute.xlu0 %994
        %v996 = vsel %vm792, %v993, %v995
        %v997 = vsel %vm792, %v995, %v993
        %v998 = vsel %vm494, %v997, 0.0
        %v999 = vsel %vm495, %v996, 0.0
        %v1000 = vadd.f32 %v986, %v998
        %v1001 = vadd.f32 %v987, %v999
        %v1002 = vsel %vm500, %v937, 0.0
        %v1003 = vsel %vm501, %v939, 0.0
        %v1006 = vrot.slane %v1002, 4
        %v1007 = vrot.slane %v1003, 4
        %v1010 = vadd.f32 %v1000, %v1006
        %v1011 = vadd.f32 %v1001, %v1007
        %v1012 = vrot.slane %v937, 5
        %v1013 = vrot.slane %v939, 5
        %1016 = vrot.lane.b32.xlu0 %v1012, 127
        %v1017 = vpop.permute.xlu0 %1016
        %1018 = vrot.lane.b32.xlu0 %v1013, 127
        %v1019 = vpop.permute.xlu0 %1018
        %v1020 = vsel %vm626, %v1017, %v1019
        %v1021 = vsel %vm626, %v1019, %v1017
        %v1022 = vsel %vm508, %v1020, 0.0
        %v1023 = vsel %vm509, %v1021, 0.0
        %v1024 = vadd.f32 %v1010, %v1022
        %v1025 = vadd.f32 %v1011, %v1023
        %v1026 = vrot.slane %v937, 6
        %v1027 = vrot.slane %v939, 6
        %1030 = vrot.lane.b32.xlu0 %v1026, 126
        %v1031 = vpop.permute.xlu0 %1030
        %1032 = vrot.lane.b32.xlu0 %v1027, 126
        %v1033 = vpop.permute.xlu0 %1032
        %v1034 = vsel %vm635, %v1031, %v1033
        %v1035 = vsel %vm635, %v1033, %v1031
        %v1036 = vsel %vm516, %v1034, 0.0
        %v1037 = vsel %vm517, %v1035, 0.0
        %v1038 = vadd.f32 %v1024, %v1036
        %v1039 = vadd.f32 %v1025, %v1037
        %v1040 = vrot.slane %v937, 7
        %v1041 = vrot.slane %v939, 7
        %1044 = vrot.lane.b32.xlu0 %v1040, 125
        %v1045 = vpop.permute.xlu0 %1044
        %1046 = vrot.lane.b32.xlu0 %v1041, 125
        %v1047 = vpop.permute.xlu0 %1046
        %vm1048 = vcmp.lt.s32.totalorder %v402, 125
        %v1049 = vsel %vm1048, %v1045, %v1047
        %v1050 = vsel %vm1048, %v1047, %v1045
        %v1051 = vsel %vm524, %v1049, 0.0
        %v1052 = vsel %vm525, %v1050, 0.0
        %v1053 = vadd.f32 %v1038, %v1051
        %v1054 = vadd.f32 %v1039, %v1052
        %1055 = vrot.lane.b32.xlu0 %v943, 124
        %v1056 = vpop.permute.xlu0 %1055
        %1057 = vrot.lane.b32.xlu0 %v945, 124
        %v1058 = vpop.permute.xlu0 %1057
        %v1059 = vsel %vm644, %v1056, %v1058
        %v1060 = vsel %vm644, %v1058, %v1056
        %v1061 = vsel %vm532, %v1059, 0.0
        %v1062 = vsel %vm533, %v1060, 0.0
        %v1063 = vadd.f32 %v1053, %v1061
        %v1064 = vadd.f32 %v1054, %v1062
        %v1065 = vstv %s400
        %v1066 = vadd.f32 %v1063, %v1065
        %v1067 = vadd.f32 %v1064, %v1065
        %v1068 = vxor.u32 %v1066, 2147483648
        %v1069 = vxor.u32 %v1067, 2147483648
        %v1070 = vmul.f32 %v1068, 1.442695
        %v1071 = vpow.pop %v1070
        %v1072 = vmul.f32 %v1069, 1.442695
        %v1073 = vpow.pop %v1072
        %v1074 = vadd.f32 %v1071, 1.0
        %v1075 = vadd.f32 %v1073, 1.0
        %v1076 = vrcp.pop %v1074
        %v1077 = vmul.f32 1.0, %v1076
        %v1078 = vrcp.pop %v1075
        %v1079 = vmul.f32 1.0, %v1078
        %1080 = vrot.lane.b32.xlu0 %v1077, 16
        %v1081 = vpop.permute.xlu0 %1080
        %1082 = vrot.lane.b32.xlu0 %v1079, 16
        %v1083 = vpop.permute.xlu0 %1082
        %v1084 = vsel %vm739, %v1081, %v1083
        %v1085 = vsel %vm739, %v1083, %v1081
        %v1086 = vsel %vm428, %v1085, %v1077
        %v1087 = vsel %vm429, %v1084, %v1079
        %1088 = vrot.lane.b32.xlu0 %v1086, 32
        %v1089 = vpop.permute.xlu0 %1088
        %1090 = vrot.lane.b32.xlu0 %v1087, 32
        %v1091 = vpop.permute.xlu0 %1090
        %vm1092 = vcmp.lt.s32.totalorder %v402, 32
        %v1093 = vsel %vm1092, %v1089, %v1091
        %v1094 = vsel %vm1092, %v1091, %v1089
        %v1095 = vsel %vm432, %v1094, %v1086
        %v1096 = vsel %vm433, %v1093, %v1087
        %1097 = vrot.lane.b32.xlu0 %v1095, 64
        %v1098 = vpop.permute.xlu0 %1097
        %1099 = vrot.lane.b32.xlu0 %v1096, 64
        %v1100 = vpop.permute.xlu0 %1099
        %v1101 = vsel %vm857, %v1098, %v1100
        %v1102 = vsel %vm857, %v1100, %v1098
        %v1103 = vsel %vm436, %v1102, %v1095
        %v1104 = vsel %vm437, %v1101, %v1096
        %v1105 = vsel %vm440, %v1104, %v1103
        %v1106 = vsel %vm441, %v1103, %v1104
        %v1107 = vadd.f32 %v1105, 1.0
        %v1108 = vadd.f32 %v1106, 1.0
        %v1109 = vlaneseq
        %v1110 = vshrl.u32 %v1109, 7
        %v1111 = vsub.s32 0, %v1110
        %v1112 = vrot.slane %v1107, %v1111
        %v1113 = vlaneseq
        %v1114 = vshrl.u32 %v1113, 7
        %v1115 = vsub.s32 0, %v1114
        %v1116 = vrot.slane %v1108, %v1115
        %v1117 = vmul.f32 %v834, %v1112
        %v1118 = vmul.f32 %v835, %v1116
        %1119 = vrot.lane.b32.xlu0 %v1117, 127
        %v1120 = vpop.permute.xlu0 %1119
        %1121 = vrot.lane.b32.xlu0 %v1118, 127
        %v1122 = vpop.permute.xlu0 %1121
        %v1123 = vsel %vm626, %v1120, %v1122
        %v1124 = vsel %vm626, %v1122, %v1120
        %v1125 = vadd.f32 %v1117, %v1123
        %v1126 = vadd.f32 %v1118, %v1124
        %1127 = vrot.lane.b32.xlu0 %v1125, 126
        %v1128 = vpop.permute.xlu0 %1127
        %1129 = vrot.lane.b32.xlu0 %v1126, 126
        %v1130 = vpop.permute.xlu0 %1129
        %v1131 = vsel %vm635, %v1128, %v1130
        %v1132 = vsel %vm635, %v1130, %v1128
        %v1133 = vadd.f32 %v1125, %v1131
        %v1134 = vadd.f32 %v1126, %v1132
        %1135 = vrot.lane.b32.xlu0 %v1133, 124
        %v1136 = vpop.permute.xlu0 %1135
        %1137 = vrot.lane.b32.xlu0 %v1134, 124
        %v1138 = vpop.permute.xlu0 %1137
        %v1139 = vsel %vm644, %v1136, %v1138
        %v1140 = vsel %vm644, %v1138, %v1136
        %v1141 = vadd.f32 %v1133, %v1139
        %v1142 = vadd.f32 %v1134, %v1140
        %1143 = vrot.lane.b32.xlu0 %v1141, 120
        %v1144 = vpop.permute.xlu0 %1143
        %1145 = vrot.lane.b32.xlu0 %v1142, 120
        %v1146 = vpop.permute.xlu0 %1145
        %v1147 = vsel %vm653, %v1144, %v1146
        %v1148 = vsel %vm653, %v1146, %v1144
        %v1149 = vadd.f32 %v1141, %v1147
        %v1150 = vadd.f32 %v1142, %v1148
        %1151 = vrot.lane.b32.xlu0 %v1149, 112
        %v1152 = vpop.permute.xlu0 %1151
        %1153 = vrot.lane.b32.xlu0 %v1150, 112
        %v1154 = vpop.permute.xlu0 %1153
        %v1155 = vsel %vm766, %v1152, %v1154
        %v1156 = vsel %vm766, %v1154, %v1152
        %v1157 = vadd.f32 %v1149, %v1155
        %v1158 = vadd.f32 %v1150, %v1156
        %1159 = vrot.lane.b32.xlu0 %v1157, 96
        %v1160 = vpop.permute.xlu0 %1159
        %1161 = vrot.lane.b32.xlu0 %v1158, 96
        %v1162 = vpop.permute.xlu0 %1161
        %v1163 = vsel %vm848, %v1160, %v1162
        %v1164 = vsel %vm848, %v1162, %v1160
        %v1165 = vadd.f32 %v1157, %v1163
        %v1166 = vadd.f32 %v1158, %v1164
        %1167 = vrot.lane.b32.xlu0 %v1165, 64
        %v1168 = vpop.permute.xlu0 %1167
        %1169 = vrot.lane.b32.xlu0 %v1166, 64
        %v1170 = vpop.permute.xlu0 %1169
        %v1171 = vsel %vm857, %v1168, %v1170
        %v1172 = vsel %vm857, %v1170, %v1168
        %v1173 = vadd.f32 %v1165, %v1171
        %v1174 = vadd.f32 %v1166, %v1172
        %v1175 = vadd.f32 %v1173, %v1174
        %v1176 = vmul.f32 %v1175, 0.00390625
        %1178 = vset.pattern.permute.xlu0 0
        %1179 = vperm.xlu0 %1178, %v396
        %v1180 = vpop.permute.xlu0 %1179
        %v1183 = vsel %vm660, %v395, 0
        %1185 = vmatprep.subr.mxu0 %v1176
        %1186 = vmatpush1.msra.mxu0 %v1176
        %1187 = vmatprep.subr.mxu0 0.0
        %1188 = vmatpush1.msra.mxu0 0.0
        %1189 = vmatprep.subr.mxu0 0.0
        %1190 = vmatpush1.msra.mxu0 0.0
        %1191 = vmatprep.subr.mxu0 0.0
        %1192 = vmatpush1.msra.mxu0 0.0
        %1193 = vmatprep.subr.mxu0 0.0
        %1194 = vmatpush1.msra.mxu0 0.0
        %1195 = vmatprep.subr.mxu0 0.0
        %1196 = vmatpush1.msra.mxu0 0.0
        %1197 = vmatprep.subr.mxu0 0.0
        %1198 = vmatpush1.msra.mxu0 0.0
        %1199 = vmatprep.subr.mxu0 0.0
        %1200 = vmatpush1.msra.mxu0 0.0
        %1201 = vmatprep.subr.mxu0 0.0
        %1202 = vmatpush1.msra.mxu0 0.0
        %1203 = vmatprep.subr.mxu0 0.0
        %1204 = vmatpush1.msra.mxu0 0.0
        %1205 = vmatprep.subr.mxu0 0.0
        %1206 = vmatpush1.msra.mxu0 0.0
        %1207 = vmatprep.subr.mxu0 0.0
        %1208 = vmatpush1.msra.mxu0 0.0
        %1209 = vmatprep.subr.mxu0 0.0
        %1210 = vmatpush1.msra.mxu0 0.0
        %1211 = vmatprep.subr.mxu0 0.0
        %1212 = vmatpush1.msra.mxu0 0.0
        %1213 = vmatprep.subr.mxu0 0.0
        %1214 = vmatpush1.msra.mxu0 0.0
        %1215 = vmatprep.subr.mxu0 0.0
        %1216 = vmatpush1.msra.mxu0 0.0
        %1217 = vmatprep.subr.mxu0 0.0
        %1218 = vmatpush1.msra.mxu0 0.0
        %1219 = vmatprep.subr.mxu0 0.0
        %1220 = vmatpush1.msra.mxu0 0.0
        %1221 = vmatprep.subr.mxu0 0.0
        %1222 = vmatpush1.msra.mxu0 0.0
        %1223 = vmatprep.subr.mxu0 0.0
        %1224 = vmatpush1.msra.mxu0 0.0
        %1225 = vmatprep.subr.mxu0 0.0
        %1226 = vmatpush1.msra.mxu0 0.0
        %1227 = vmatprep.subr.mxu0 0.0
        %1228 = vmatpush1.msra.mxu0 0.0
        %1229 = vmatprep.subr.mxu0 0.0
        %1230 = vmatpush1.msra.mxu0 0.0
        %1231 = vmatprep.subr.mxu0 0.0
        %1232 = vmatpush1.msra.mxu0 0.0
        %1233 = vmatprep.subr.mxu0 0.0
        %1234 = vmatpush1.msra.mxu0 0.0
        %1235 = vmatprep.subr.mxu0 0.0
        %1236 = vmatpush1.msra.mxu0 0.0
        %1237 = vmatprep.subr.mxu0 0.0
        %1238 = vmatpush1.msra.mxu0 0.0
        %1239 = vmatprep.subr.mxu0 0.0
        %1240 = vmatpush1.msra.mxu0 0.0
        %1241 = vmatprep.subr.mxu0 0.0
        %1242 = vmatpush1.msra.mxu0 0.0
        %1243 = vmatprep.subr.mxu0 0.0
        %1244 = vmatpush1.msra.mxu0 0.0
        %1245 = vmatprep.subr.mxu0 0.0
        %1246 = vmatpush1.msra.mxu0 0.0
        %1247 = vmatprep.subr.mxu0 0.0
        %1248 = vmatpush1.msra.mxu0 0.0
        %1249 = vmatprep.mubr.f32.mxu0 0.0
        %1250 = vmatmul.mubr.f32.gmra.mrb[0].mxu0 %v1183
        %v1251 = vpop.f32.mrb[0].mxu0
        %v1252 = vadd.f32 %v1180, %v1251
        %v1253 = vpop.f32.mrb[0].mxu0
        %v1254 = vadd.f32 %v1180, %v1253
        %1255 = vdwg.mxu0
        %v1256 = vmax.f32 %v1252, 0.0
        %v1257 = vmax.f32 %v1254, 0.0
        %1258 = vrot.lane.b32.xlu0 %v1256, 1
        %v1259 = vpop.permute.xlu0 %1258
        %1260 = vrot.lane.b32.xlu0 %v1257, 1
        %v1261 = vpop.permute.xlu0 %1260
        %v1262 = vsel %vm792, %v1259, %v1261
        %v1263 = vsel %vm792, %v1261, %v1259
        %v1264 = vsel %vm412, 1, 0
        %v1265 = vsel %vm413, 1, 0
        %vm1266 = vcmp.eq.s32.totalorder %v1264, 1
        %vm1267 = vcmp.eq.s32.totalorder %v1265, 1
        %v1268 = vsel %vm1266, %v1263, %v1256
        %v1269 = vsel %vm1267, %v1262, %v1257
        %1270 = vrot.lane.b32.xlu0 %v1268, 2
        %v1271 = vpop.permute.xlu0 %1270
        %1272 = vrot.lane.b32.xlu0 %v1269, 2
        %v1273 = vpop.permute.xlu0 %1272
        %v1274 = vsel %vm801, %v1271, %v1273
        %v1275 = vsel %vm801, %v1273, %v1271
        %v1276 = vsel %vm416, 1, 0
        %v1277 = vsel %vm417, 1, 0
        %vm1278 = vcmp.eq.s32.totalorder %v1276, 1
        %vm1279 = vcmp.eq.s32.totalorder %v1277, 1
        %v1280 = vsel %vm1278, %v1275, %v1268
        %v1281 = vsel %vm1279, %v1274, %v1269
        %1282 = vrot.lane.b32.xlu0 %v1280, 4
        %v1283 = vpop.permute.xlu0 %1282
        %1284 = vrot.lane.b32.xlu0 %v1281, 4
        %v1285 = vpop.permute.xlu0 %1284
        %v1286 = vsel %vm810, %v1283, %v1285
        %v1287 = vsel %vm810, %v1285, %v1283
        %v1288 = vsel %vm420, 1, 0
        %v1289 = vsel %vm421, 1, 0
        %vm1290 = vcmp.eq.s32.totalorder %v1288, 1
        %vm1291 = vcmp.eq.s32.totalorder %v1289, 1
        %v1292 = vsel %vm1290, %v1287, %v1280
        %v1293 = vsel %vm1291, %v1286, %v1281
        %1294 = vrot.lane.b32.xlu0 %v1292, 8
        %v1295 = vpop.permute.xlu0 %1294
        %1296 = vrot.lane.b32.xlu0 %v1293, 8
        %v1297 = vpop.permute.xlu0 %1296
        %v1298 = vsel %vm819, %v1295, %v1297
        %v1299 = vsel %vm819, %v1297, %v1295
        %v1300 = vsel %vm424, 1, 0
        %v1301 = vsel %vm425, 1, 0
        %vm1302 = vcmp.eq.s32.totalorder %v1300, 1
        %vm1303 = vcmp.eq.s32.totalorder %v1301, 1
        %v1304 = vsel %vm1302, %v1299, %v1292
        %v1305 = vsel %vm1303, %v1298, %v1293
        %1306 = vrot.lane.b32.xlu0 %v1304, 16
        %v1307 = vpop.permute.xlu0 %1306
        %1308 = vrot.lane.b32.xlu0 %v1305, 16
        %v1309 = vpop.permute.xlu0 %1308
        %v1310 = vsel %vm739, %v1307, %v1309
        %v1311 = vsel %vm739, %v1309, %v1307
        %v1312 = vsel %vm428, 1, 0
        %v1313 = vsel %vm429, 1, 0
        %vm1314 = vcmp.eq.s32.totalorder %v1312, 1
        %vm1315 = vcmp.eq.s32.totalorder %v1313, 1
        %v1316 = vsel %vm1314, %v1311, %v1304
        %v1317 = vsel %vm1315, %v1310, %v1305
        %1318 = vrot.lane.b32.xlu0 %v1316, 32
        %v1319 = vpop.permute.xlu0 %1318
        %1320 = vrot.lane.b32.xlu0 %v1317, 32
        %v1321 = vpop.permute.xlu0 %1320
        %v1322 = vsel %vm1092, %v1319, %v1321
        %v1323 = vsel %vm1092, %v1321, %v1319
        %v1324 = vsel %vm432, 1, 0
        %v1325 = vsel %vm433, 1, 0
        %vm1326 = vcmp.eq.s32.totalorder %v1324, 1
        %vm1327 = vcmp.eq.s32.totalorder %v1325, 1
        %v1328 = vsel %vm1326, %v1323, %v1316
        %v1329 = vsel %vm1327, %v1322, %v1317
        %1330 = vrot.lane.b32.xlu0 %v1328, 64
        %v1331 = vpop.permute.xlu0 %1330
        %1332 = vrot.lane.b32.xlu0 %v1329, 64
        %v1333 = vpop.permute.xlu0 %1332
        %v1334 = vsel %vm857, %v1331, %v1333
        %v1335 = vsel %vm857, %v1333, %v1331
        %v1336 = vsel %vm436, 1, 0
        %v1337 = vsel %vm437, 1, 0
        %vm1338 = vcmp.eq.s32.totalorder %v1336, 1
        %vm1339 = vcmp.eq.s32.totalorder %v1337, 1
        %v1340 = vsel %vm1338, %v1335, %v1328
        %v1341 = vsel %vm1339, %v1334, %v1329
        %v1342 = vsel %vm440, 1, 0
        %v1343 = vsel %vm441, 1, 0
        %vm1344 = vcmp.eq.s32.totalorder %v1342, 1
        %vm1345 = vcmp.eq.s32.totalorder %v1343, 1
        %v1346 = vsel %vm1344, %v1341, %v1340
        %v1347 = vsel %vm1345, %v1340, %v1341
        %1349 = vset.pattern.permute.xlu0 0
        %1350 = vperm.xlu0 %1349, %v398
        %v1351 = vpop.permute.xlu0 %1350
        %v1354 = vsel %vm542, %v397, 0
        %v1357 = vsel %vm546, %v1346, 0
        %v1360 = vsel %vm546, %v1347, 0
        %1362 = vmatprep.subr.mxu0 %v1360
        %1363 = vmatpush1.msra.mxu0 %v1357
        %1364 = vmatprep.subr.mxu0 0.0
        %1365 = vmatpush1.msra.mxu0 0.0
        %1366 = vmatprep.subr.mxu0 0.0
        %1367 = vmatpush1.msra.mxu0 0.0
        %1368 = vmatprep.subr.mxu0 0.0
        %1369 = vmatpush1.msra.mxu0 0.0
        %1370 = vmatprep.subr.mxu0 0.0
        %1371 = vmatpush1.msra.mxu0 0.0
        %1372 = vmatprep.subr.mxu0 0.0
        %1373 = vmatpush1.msra.mxu0 0.0
        %1374 = vmatprep.subr.mxu0 0.0
        %1375 = vmatpush1.msra.mxu0 0.0
        %1376 = vmatprep.subr.mxu0 0.0
        %1377 = vmatpush1.msra.mxu0 0.0
        %1378 = vmatprep.subr.mxu0 0.0
        %1379 = vmatpush1.msra.mxu0 0.0
        %1380 = vmatprep.subr.mxu0 0.0
        %1381 = vmatpush1.msra.mxu0 0.0
        %1382 = vmatprep.subr.mxu0 0.0
        %1383 = vmatpush1.msra.mxu0 0.0
        %1384 = vmatprep.subr.mxu0 0.0
        %1385 = vmatpush1.msra.mxu0 0.0
        %1386 = vmatprep.subr.mxu0 0.0
        %1387 = vmatpush1.msra.mxu0 0.0
        %1388 = vmatprep.subr.mxu0 0.0
        %1389 = vmatpush1.msra.mxu0 0.0
        %1390 = vmatprep.subr.mxu0 0.0
        %1391 = vmatpush1.msra.mxu0 0.0
        %1392 = vmatprep.subr.mxu0 0.0
        %1393 = vmatpush1.msra.mxu0 0.0
        %1394 = vmatprep.subr.mxu0 0.0
        %1395 = vmatpush1.msra.mxu0 0.0
        %1396 = vmatprep.subr.mxu0 0.0
        %1397 = vmatpush1.msra.mxu0 0.0
        %1398 = vmatprep.subr.mxu0 0.0
        %1399 = vmatpush1.msra.mxu0 0.0
        %1400 = vmatprep.subr.mxu0 0.0
        %1401 = vmatpush1.msra.mxu0 0.0
        %1402 = vmatprep.subr.mxu0 0.0
        %1403 = vmatpush1.msra.mxu0 0.0
        %1404 = vmatprep.subr.mxu0 0.0
        %1405 = vmatpush1.msra.mxu0 0.0
        %1406 = vmatprep.subr.mxu0 0.0
        %1407 = vmatpush1.msra.mxu0 0.0
        %1408 = vmatprep.subr.mxu0 0.0
        %1409 = vmatpush1.msra.mxu0 0.0
        %1410 = vmatprep.subr.mxu0 0.0
        %1411 = vmatpush1.msra.mxu0 0.0
        %1412 = vmatprep.subr.mxu0 0.0
        %1413 = vmatpush1.msra.mxu0 0.0
        %1414 = vmatprep.subr.mxu0 0.0
        %1415 = vmatpush1.msra.mxu0 0.0
        %1416 = vmatprep.subr.mxu0 0.0
        %1417 = vmatpush1.msra.mxu0 0.0
        %1418 = vmatprep.subr.mxu0 0.0
        %1419 = vmatpush1.msra.mxu0 0.0
        %1420 = vmatprep.subr.mxu0 0.0
        %1421 = vmatpush1.msra.mxu0 0.0
        %1422 = vmatprep.subr.mxu0 0.0
        %1423 = vmatpush1.msra.mxu0 0.0
        %1424 = vmatprep.subr.mxu0 0.0
        %1425 = vmatpush1.msra.mxu0 0.0
        %1426 = vmatprep.mubr.f32.mxu0 0.0
        %1427 = vmatmul.mubr.f32.gmra.mrb[0].mxu0 %v1354
        %v1428 = vpop.f32.mrb[0].mxu0
        %v1429 = vadd.f32 %v1351, %v1428
        %v1430 = vpop.f32.mrb[0].mxu0
        %v1431 = vadd.f32 %v1351, %v1430
        %1432 = vdwg.mxu0
        %v1433 = vxor.u32 %v1429, 2147483648
        %v1434 = vxor.u32 %v1431, 2147483648
        %v1435 = vmul.f32 %v1433, 1.442695
        %v1436 = vpow.pop %v1435
        %v1437 = vmul.f32 %v1434, 1.442695
        %v1438 = vpow.pop %v1437
        %v1439 = vadd.f32 %v1436, 1.0
        %v1440 = vadd.f32 %v1438, 1.0
        %v1441 = vrcp.pop %v1439
        %v1442 = vmul.f32 1.0, %v1441
        %v1443 = vrcp.pop %v1440
        %v1444 = vmul.f32 1.0, %v1443
        %v1445 = vadd.f32 %v1442, 1.0
        %v1446 = vadd.f32 %v1444, 1.0
        %v1447 = vmul.f32 %v1117, %v1445
        %v1448 = vmul.f32 %v1118, %v1446
        %1449 = vst [vmem:[%s382] sm:$0xff] %v1447
        %1450 = vst [vmem:[%s382 + $0x8] sm:$0xff] %v1448
        %s1451 = sand.u32 %s271, 1
        %s1452 = scalar_lea.sflag [#allocation5], %s1451
        %s1453 = sand.u32 %s271, 1
        %s1454 = smul.addr %s1453, 16
        %s1455 = scalar_lea.vmem [#allocation4], %s1454
        // Predicated region
        $region65: #{tpu_custom_call.1} parent=63 // pred_check
          %p1456 = pneg %p281
        $region66: #{tpu_custom_call.1} parent=63 // pred_check_branch
          %1458 = sbr.rel (%p1456) target = $region68
        $region67: #{tpu_custom_call.1} parent=63 // pred_region
          %s1459 = smul.u32 2, %s27
          %s1461 = ssub.s32 256, 256
          %1462 = vsyncadd %s1452, %s1461
          %s1463 = smul.addr %s1459, 128
          %s1464 = scalar_lea.hbm %s11, %s1463
          %s1466 = sshll.u32 %s1455, 4
          %s1467 = int_to_ptr.vmem [resolvable:$true] %s1466
          %1469 = dma.vmem_to_hbm [thread:$0]  %s1467, 256, %s1464, %s1452
        $region68: #{tpu_custom_call.1} parent=63 // pred_fallthru
          _
      $region64: #{tpu_custom_call.1} parent=5 // pred_fallthru
        _
      %p1470 = scmp.le.s32.totalorder 2, %s22
      // Predicated region
      $region69: #{tpu_custom_call.1} parent=5 // pred_check
        %p1471 = pneg %p1470
      $region70: #{tpu_custom_call.1} parent=5 // pred_check_branch
        %1473 = sbr.rel (%p1471) target = $region72
      $region71: #{tpu_custom_call.1} parent=5 // pred_region
        %s1474 = ssub.s32 %s22, 2
        // Predicated region
        $region73: #{tpu_custom_call.1} parent=71 // pred_check
          %p1475 = pneg %p287
        $region74: #{tpu_custom_call.1} parent=71 // pred_check_branch
          %1477 = sbr.rel (%p1475) target = $region76
        $region75: #{tpu_custom_call.1} parent=71 // pred_region
          %s1478 = sand.u32 %s272, 1
          %s1479 = scalar_lea.sflag [#allocation5], %s1478
          %s1480 = sand.u32 %s272, 1
          %s1481 = smul.addr %s1480, 16
          %s1482 = scalar_lea.vmem [#allocation4], %s1481
          %1483 = dma.done %s1479, 256
        $region76: #{tpu_custom_call.1} parent=71 // pred_fallthru
          _
      $region72: #{tpu_custom_call.1} parent=5 // pred_fallthru
        _
    $region6: #{tpu_custom_call.1} parent=1 // loop_footer
      %s26 = sadd.s32 1, %s22
    $region7: #{tpu_custom_call.1} parent=1 // loop_footer_branch
      %21 = sbr.rel target = $region3
    $region8: #{tpu_custom_call.1} parent=1 // loop_exit
      _
    %1484 = vsyncpa [#allocation5], 1
    %s1485 = scalar_lea.sflag [#allocation5], 1
    %1486 = vsyncpa %s1485, 1

</llo_original>
